<compile_context>
chip_gen: v7x
topology: tpu7x:2x2x1
jax: 0.10.0
libtpu: 0.0.40
codegen_flags: <defaults>
</compile_context>

<pallas_src>
import functools

import jax
import jax.numpy as jnp
import numpy as np
from jax.experimental import pallas as pl
from jax.experimental.pallas import tpu as pltpu


def _decoder_kernel(word_ref,           # SMEM (B_pad,) int32 token ids (scalar prefetch)
                    emb_hbm,            # ANY  (V, E)  f32   embedding table (HBM)
                    wih_ref,            # VMEM (E, 4H) bf16
                    whh_ref,            # VMEM (H, 4H) bf16
                    b_ref,              # VMEM (1, 4H) f32
                    wcls_ref,           # VMEM (H, TV) bf16  classifier weight tile
                    bcls_ref,           # VMEM (1, TV) f32   classifier bias tile
                    h0_ref, c0_ref,     # VMEM (B_pad, H) f32
                    logits_ref,         # VMEM (B_pad, TV) f32  output logits tile
                    h1_ref, c1_ref,     # VMEM (B_pad, H)  f32  output state
                    emb_buf,            # VMEM scratch (B_pad, E) f32
                    h_bf16,             # VMEM scratch (B_pad, H) bf16 (resident)
                    dma_sem,            # DMA semaphores (B_pad,)
                    *, real_batch):
    B_pad, H = h0_ref.shape
    E = emb_buf.shape[1]

    # The LSTM cell (and the embedding gather feeding it) only needs to run
    # once; its bf16 result lives in VMEM scratch across all vocab tiles.
    @pl.when(pl.program_id(0) == 0)
    def _lstm_step():
        # True gather: DMA only the real_batch requested rows of the HBM table.
        for b in range(real_batch):
            pltpu.make_async_copy(
                emb_hbm.at[pl.ds(word_ref[b], 1)],
                emb_buf.at[pl.ds(b, 1)],
                dma_sem.at[b]).start()
        for b in range(real_batch):
            pltpu.make_async_copy(
                emb_hbm.at[pl.ds(word_ref[b], 1)],
                emb_buf.at[pl.ds(b, 1)],
                dma_sem.at[b]).wait()
        if real_batch < B_pad:
            emb_buf[real_batch:, :] = jnp.zeros(
                (B_pad - real_batch, E), emb_buf.dtype)

        embedded = emb_buf[...].astype(jnp.bfloat16)               # (B_pad, E)

        # Single LSTM cell step; PyTorch gate order i, f, g, o packed in 4H.
        # (Gate slices are lane-aligned when H % 128 == 0, as in the demo.)
        z = (jnp.dot(embedded, wih_ref[...],
                     preferred_element_type=jnp.float32)
             + jnp.dot(h0_ref[...].astype(jnp.bfloat16), whh_ref[...],
                       preferred_element_type=jnp.float32)
             + b_ref[...])                                         # (B_pad, 4H) f32
        i_g = jax.nn.sigmoid(z[:, 0:H])
        f_g = jax.nn.sigmoid(z[:, H:2 * H])
        g_g = jnp.tanh(z[:, 2 * H:3 * H])
        o_g = jax.nn.sigmoid(z[:, 3 * H:4 * H])

        c1 = f_g * c0_ref[...] + i_g * g_g
        h1 = o_g * jnp.tanh(c1)
        h1_ref[...] = h1
        c1_ref[...] = c1
        h_bf16[...] = h1.astype(jnp.bfloat16)      # cast once, reuse per tile

    # Classifier: resident bf16 h1 scratch x streamed bf16 weight tile
    # (f32 accumulation on the MXU), lane-dense (B_pad, TV) output store.
    logits_ref[...] = (
        jnp.dot(h_bf16[...], wcls_ref[...],
                preferred_element_type=jnp.float32)
        + bcls_ref[...])


@functools.partial(jax.jit, static_argnames=("v_tile",))
def language_decoder_forward(word, hidden_state, params, *, v_tile=256):
    """Pallas equivalent of LanguageDecoder.forward.

    word:         (B, 1) int32 token ids
    hidden_state: tuple (h0, c0), each (1, B, H) float32 (PyTorch convention)
    returns:      (logits (B, V), (h1 (1, B, H), c1 (1, B, H)))
    """
    h0, c0 = hidden_state
    h0_2d, c0_2d = h0[0], c0[0]

    B = word.shape[0]
    V, E = params["embedding"].shape
    H = h0_2d.shape[1]

    tv = min(v_tile, V)
    assert V % tv == 0, "vocab size must be a multiple of the vocab tile"
    nvt = V // tv

    # Pad batch (sublane axis) to a multiple of 8 so operands/outputs are
    # full (8, 128) tiles and all stores are unmasked.
    B_pad = ((B + 7) // 8) * 8
    pad = B_pad - B
    word_ids = jnp.clip(word[:, 0].astype(jnp.int32), 0, V - 1)
    word_ids = jnp.pad(word_ids, (0, pad))
    h0_p = jnp.pad(h0_2d.astype(jnp.float32), ((0, pad), (0, 0)))
    c0_p = jnp.pad(c0_2d.astype(jnp.float32), ((0, pad), (0, 0)))

    grid_spec = pltpu.PrefetchScalarGridSpec(
        num_scalar_prefetch=1,                                   # word ids -> SMEM
        grid=(nvt,),
        in_specs=[
            pl.BlockSpec(memory_space=pl.ANY),                   # embedding (HBM)
            pl.BlockSpec((E, 4 * H), lambda j, ids: (0, 0)),     # w_ih^T (resident)
            pl.BlockSpec((H, 4 * H), lambda j, ids: (0, 0)),     # w_hh^T (resident)
            pl.BlockSpec((1, 4 * H), lambda j, ids: (0, 0)),     # lstm bias
            pl.BlockSpec((H, tv), lambda j, ids: (0, j)),        # classifier W^T tile
            pl.BlockSpec((1, tv), lambda j, ids: (0, j)),        # classifier bias tile
            pl.BlockSpec((B_pad, H), lambda j, ids: (0, 0)),     # h0
            pl.BlockSpec((B_pad, H), lambda j, ids: (0, 0)),     # c0
        ],
        out_specs=(
            pl.BlockSpec((B_pad, tv), lambda j, ids: (0, j)),    # logits tile
            pl.BlockSpec((B_pad, H), lambda j, ids: (0, 0)),     # h1
            pl.BlockSpec((B_pad, H), lambda j, ids: (0, 0)),     # c1
        ),
        scratch_shapes=[
            pltpu.VMEM((B_pad, E), jnp.float32),    # gathered embedding rows
            pltpu.VMEM((B_pad, H), jnp.bfloat16),   # bf16 h1 (resident across tiles)
            pltpu.SemaphoreType.DMA((B_pad,)),      # one DMA sem per gathered row
        ],
    )

    logits_p, h1_p, c1_p = pl.pallas_call(
        functools.partial(_decoder_kernel, real_batch=B),
        out_shape=(
            jax.ShapeDtypeStruct((B_pad, V), jnp.float32),
            jax.ShapeDtypeStruct((B_pad, H), jnp.float32),
            jax.ShapeDtypeStruct((B_pad, H), jnp.float32),
        ),
        grid_spec=grid_spec,
        compiler_params=pltpu.CompilerParams(
            dimension_semantics=("arbitrary",),     # state reused across vocab tiles
            vmem_limit_bytes=32 * 1024 * 1024),
    )(
        word_ids,
        params["embedding"].astype(jnp.float32),
        params["w_ih_T"],
        params["w_hh_T"],
        params["b_lstm"],
        params["w_cls_T"],
        params["b_cls"],
        h0_p,
        c0_p,
    )

    logits = logits_p[:B]
    h1 = h1_p[:B][None]
    c1 = c1_p[:B][None]
    return logits, (h1, c1)


def _make_params(key, vocab_size, embedding_size, decoding_size):
    ks = jax.random.split(key, 7)
    H = decoding_size
    bound = 1.0 / np.sqrt(H)
    emb = jax.random.normal(ks[0], (vocab_size, embedding_size), jnp.float32)
    w_ih = jax.random.uniform(ks[1], (4 * H, embedding_size), jnp.float32, -bound, bound)
    w_hh = jax.random.uniform(ks[2], (4 * H, H), jnp.float32, -bound, bound)
    b_ih = jax.random.uniform(ks[3], (4 * H,), jnp.float32, -bound, bound)
    b_hh = jax.random.uniform(ks[4], (4 * H,), jnp.float32, -bound, bound)
    w_cls = jax.random.uniform(ks[5], (vocab_size, H), jnp.float32, -bound, bound)
    b_cls = jax.random.uniform(ks[6], (vocab_size,), jnp.float32, -bound, bound)
    return {
        "embedding": emb,                                       # (V, E) f32 (gathered)
        "w_ih_T": w_ih.T.astype(jnp.bfloat16),                  # (E, 4H)
        "w_hh_T": w_hh.T.astype(jnp.bfloat16),                  # (H, 4H)
        "b_lstm": (b_ih + b_hh)[None, :].astype(jnp.float32),   # (1, 4H)
        "w_cls_T": w_cls.T.astype(jnp.bfloat16),                # (H, V)
        "b_cls": b_cls[None, :].astype(jnp.float32),            # (1, V)
    }


def _reference_forward(word, hidden_state, params):
    """Pure-JAX reference mirroring the PyTorch module (and the kernel's
    bf16 weight/activation rounding, with f32 accumulation)."""
    def bf16_round(x):
        return x.astype(jnp.bfloat16).astype(jnp.float32)

    h0, c0 = hidden_state
    H = h0.shape[-1]
    emb = jnp.take(params["embedding"], word[:, 0], axis=0)      # (B, E)
    wih = params["w_ih_T"].astype(jnp.float32)
    whh = params["w_hh_T"].astype(jnp.float32)
    wcls = params["w_cls_T"].astype(jnp.float32)

    z = bf16_round(emb) @ wih + bf16_round(h0[0]) @ whh + params["b_lstm"]
    i = jax.nn.sigmoid(z[:, :H])
    f = jax.nn.sigmoid(z[:, H:2 * H])
    g = jnp.tanh(z[:, 2 * H:3 * H])
    o = jax.nn.sigmoid(z[:, 3 * H:4 * H])
    c1 = f * c0[0] + i * g
    h1 = o * jnp.tanh(c1)
    logits = bf16_round(h1) @ wcls + params["b_cls"]
    return logits, (h1[None], c1[None])


if __name__ == "__main__":
    vocab_size, embedding_size, decoding_size = 512, 128, 128
    batch = 2

    key = jax.random.PRNGKey(0)
    k_par, k_word, k_h, k_c = jax.random.split(key, 4)

    params = _make_params(k_par, vocab_size, embedding_size, decoding_size)
    word = jax.random.randint(k_word, (batch, 1), 0, vocab_size, jnp.int32)
    h0 = jax.random.normal(k_h, (1, batch, decoding_size), jnp.float32)
    c0 = jax.random.normal(k_c, (1, batch, decoding_size), jnp.float32)

    logits, (h1, c1) = language_decoder_forward(word, (h0, c0), params, v_tile=256)
    jax.block_until_ready((logits, h1, c1))

    ref_logits, (ref_h1, ref_c1) = _reference_forward(word, (h0, c0), params)
    np.testing.assert_allclose(np.asarray(logits), np.asarray(ref_logits),
                               rtol=1e-2, atol=1e-2)
    np.testing.assert_allclose(np.asarray(h1), np.asarray(ref_h1),
                               rtol=1e-2, atol=1e-2)
    np.testing.assert_allclose(np.asarray(c1), np.asarray(ref_c1),
                               rtol=1e-2, atol=1e-2)

    assert logits.shape == (batch, vocab_size)
    assert h1.shape == (1, batch, decoding_size)
    assert c1.shape == (1, batch, decoding_size)
    print("KERNEL_OK")
</pallas_src>

<mosaic_0001>
module attributes {stable_mosaic.version = 11 : i64} {
  func.func @_decoder_kernel(%arg0: i32, %arg1: memref<8xi32, #tpu.memory_space<smem>>, %arg2: memref<512x128xf32, #tpu.memory_space<any>>, %arg3: memref<128x512xbf16, #tpu.memory_space<vmem>>, %arg4: memref<128x512xbf16, #tpu.memory_space<vmem>>, %arg5: memref<1x512xf32, #tpu.memory_space<vmem>>, %arg6: memref<128x256xbf16, #tpu.memory_space<vmem>>, %arg7: memref<1x256xf32, #tpu.memory_space<vmem>>, %arg8: memref<8x128xf32, #tpu.memory_space<vmem>>, %arg9: memref<8x128xf32, #tpu.memory_space<vmem>>, %arg10: memref<8x256xf32, #tpu.memory_space<vmem>>, %arg11: memref<8x128xf32, #tpu.memory_space<vmem>>, %arg12: memref<8x128xf32, #tpu.memory_space<vmem>>, %arg13: memref<8x128xf32, #tpu.memory_space<vmem>>, %arg14: memref<8x128xbf16, #tpu.memory_space<vmem>>, %arg15: memref<8x!tpu.dma_semaphore, #tpu.memory_space<semaphore_mem>>) attributes {dimension_semantics = [#tpu.dimension_semantics<arbitrary>], iteration_bounds = array<i64: 2>, scalar_prefetch = 1 : i64, scratch_operands = 3 : i64, tpu.core_type = #tpu.core_type<tc>, window_params = [{}, {pipeline_mode = #tpu.pipeline_mode<synchronous>, transform_indices = @transform_1, window_bounds = array<i64: 128, 512>}, {pipeline_mode = #tpu.pipeline_mode<synchronous>, transform_indices = @transform_2, window_bounds = array<i64: 128, 512>}, {pipeline_mode = #tpu.pipeline_mode<synchronous>, transform_indices = @transform_3, window_bounds = array<i64: 1, 512>}, {transform_indices = @transform_4, window_bounds = array<i64: 128, 256>}, {transform_indices = @transform_5, window_bounds = array<i64: 1, 256>}, {pipeline_mode = #tpu.pipeline_mode<synchronous>, transform_indices = @transform_6, window_bounds = array<i64: 8, 128>}, {pipeline_mode = #tpu.pipeline_mode<synchronous>, transform_indices = @transform_7, window_bounds = array<i64: 8, 128>}, {transform_indices = @transform_8, window_bounds = array<i64: 8, 256>}, {pipeline_mode = #tpu.pipeline_mode<synchronous>, transform_indices = @transform_9, window_bounds = array<i64: 8, 128>}, {pipeline_mode = #tpu.pipeline_mode<synchronous>, transform_indices = @transform_10, window_bounds = array<i64: 8, 128>}]} {
    %c0_i32 = arith.constant 0 : i32
    %0 = arith.cmpi eq, %arg0, %c0_i32 : i32
    %1 = arith.extui %0 : i1 to i32
    %c0_i32_0 = arith.constant 0 : i32
    %2 = arith.cmpi ne, %1, %c0_i32_0 : i32
    scf.if %2 {
      %c0_8 = arith.constant 0 : index
      %10 = memref.load %arg1[%c0_8] : memref<8xi32, #tpu.memory_space<smem>>
      %c0_i32_9 = arith.constant 0 : i32
      %c0_i32_10 = arith.constant 0 : i32
      %11 = tpu.memref_slice %arg2[%10, %c0_i32_10] : memref<512x128xf32, #tpu.memory_space<any>> -> memref<1x128xf32, #tpu.memory_space<any>>
      %c0_i32_11 = arith.constant 0 : i32
      %c0_i32_12 = arith.constant 0 : i32
      %12 = tpu.memref_slice %arg13[%c0_i32_11, %c0_i32_12] : memref<8x128xf32, #tpu.memory_space<vmem>> -> memref<1x128xf32, #tpu.memory_space<vmem>>
      %13 = tpu.memref_slice %arg15[%c0_i32_9] : memref<8x!tpu.dma_semaphore, #tpu.memory_space<semaphore_mem>> -> memref<1x!tpu.dma_semaphore, #tpu.memory_space<semaphore_mem>>
      %14 = tpu.memref_squeeze %13 : memref<1x!tpu.dma_semaphore, #tpu.memory_space<semaphore_mem>> -> memref<!tpu.dma_semaphore, #tpu.memory_space<semaphore_mem>>
      tpu.enqueue_dma source(%11 : memref<1x128xf32, #tpu.memory_space<any>>) target(%12 : memref<1x128xf32, #tpu.memory_space<vmem>>) target_semaphore(%14 : memref<!tpu.dma_semaphore, #tpu.memory_space<semaphore_mem>>)
      %c1 = arith.constant 1 : index
      %15 = memref.load %arg1[%c1] : memref<8xi32, #tpu.memory_space<smem>>
      %c1_i32 = arith.constant 1 : i32
      %c0_i32_13 = arith.constant 0 : i32
      %16 = tpu.memref_slice %arg2[%15, %c0_i32_13] : memref<512x128xf32, #tpu.memory_space<any>> -> memref<1x128xf32, #tpu.memory_space<any>>
      %c1_i32_14 = arith.constant 1 : i32
      %c0_i32_15 = arith.constant 0 : i32
      %17 = tpu.memref_slice %arg13[%c1_i32_14, %c0_i32_15] : memref<8x128xf32, #tpu.memory_space<vmem>> -> memref<1x128xf32, #tpu.memory_space<vmem>>
      %18 = tpu.memref_slice %arg15[%c1_i32] : memref<8x!tpu.dma_semaphore, #tpu.memory_space<semaphore_mem>> -> memref<1x!tpu.dma_semaphore, #tpu.memory_space<semaphore_mem>>
      %19 = tpu.memref_squeeze %18 : memref<1x!tpu.dma_semaphore, #tpu.memory_space<semaphore_mem>> -> memref<!tpu.dma_semaphore, #tpu.memory_space<semaphore_mem>>
      tpu.enqueue_dma source(%16 : memref<1x128xf32, #tpu.memory_space<any>>) target(%17 : memref<1x128xf32, #tpu.memory_space<vmem>>) target_semaphore(%19 : memref<!tpu.dma_semaphore, #tpu.memory_space<semaphore_mem>>)
      %c0_16 = arith.constant 0 : index
      %20 = memref.load %arg1[%c0_16] : memref<8xi32, #tpu.memory_space<smem>>
      %c0_i32_17 = arith.constant 0 : i32
      %c0_i32_18 = arith.constant 0 : i32
      %21 = tpu.memref_slice %arg2[%20, %c0_i32_18] : memref<512x128xf32, #tpu.memory_space<any>> -> memref<1x128xf32, #tpu.memory_space<any>>
      %c0_i32_19 = arith.constant 0 : i32
      %c0_i32_20 = arith.constant 0 : i32
      %22 = tpu.memref_slice %arg13[%c0_i32_19, %c0_i32_20] : memref<8x128xf32, #tpu.memory_space<vmem>> -> memref<1x128xf32, #tpu.memory_space<vmem>>
      %23 = tpu.memref_slice %arg15[%c0_i32_17] : memref<8x!tpu.dma_semaphore, #tpu.memory_space<semaphore_mem>> -> memref<1x!tpu.dma_semaphore, #tpu.memory_space<semaphore_mem>>
      %24 = tpu.memref_squeeze %23 : memref<1x!tpu.dma_semaphore, #tpu.memory_space<semaphore_mem>> -> memref<!tpu.dma_semaphore, #tpu.memory_space<semaphore_mem>>
      tpu.wait_dma2 semaphore(%24 : memref<!tpu.dma_semaphore, #tpu.memory_space<semaphore_mem>>) src(%21 : memref<1x128xf32, #tpu.memory_space<any>>) dst(%22 : memref<1x128xf32, #tpu.memory_space<vmem>>)
      %c1_21 = arith.constant 1 : index
      %25 = memref.load %arg1[%c1_21] : memref<8xi32, #tpu.memory_space<smem>>
      %c1_i32_22 = arith.constant 1 : i32
      %c0_i32_23 = arith.constant 0 : i32
      %26 = tpu.memref_slice %arg2[%25, %c0_i32_23] : memref<512x128xf32, #tpu.memory_space<any>> -> memref<1x128xf32, #tpu.memory_space<any>>
      %c1_i32_24 = arith.constant 1 : i32
      %c0_i32_25 = arith.constant 0 : i32
      %27 = tpu.memref_slice %arg13[%c1_i32_24, %c0_i32_25] : memref<8x128xf32, #tpu.memory_space<vmem>> -> memref<1x128xf32, #tpu.memory_space<vmem>>
      %28 = tpu.memref_slice %arg15[%c1_i32_22] : memref<8x!tpu.dma_semaphore, #tpu.memory_space<semaphore_mem>> -> memref<1x!tpu.dma_semaphore, #tpu.memory_space<semaphore_mem>>
      %29 = tpu.memref_squeeze %28 : memref<1x!tpu.dma_semaphore, #tpu.memory_space<semaphore_mem>> -> memref<!tpu.dma_semaphore, #tpu.memory_space<semaphore_mem>>
      tpu.wait_dma2 semaphore(%29 : memref<!tpu.dma_semaphore, #tpu.memory_space<semaphore_mem>>) src(%26 : memref<1x128xf32, #tpu.memory_space<any>>) dst(%27 : memref<1x128xf32, #tpu.memory_space<vmem>>)
      %cst_26 = arith.constant 0.000000e+00 : f32
      %30 = vector.broadcast %cst_26 : f32 to vector<6x128xf32>
      %c2 = arith.constant 2 : index
      %c0_27 = arith.constant 0 : index
      %31 = vector.load %arg13[%c2, %c0_27] : memref<8x128xf32, #tpu.memory_space<vmem>>, vector<6x128xf32>
      tpu.vector_store %arg13[%c2, %c0_27], %30 {strides = array<i32>} : memref<8x128xf32, #tpu.memory_space<vmem>>, vector<6x128xf32>,
      %c0_28 = arith.constant 0 : index
      %c0_29 = arith.constant 0 : index
      %32 = vector.load %arg13[%c0_28, %c0_29] : memref<8x128xf32, #tpu.memory_space<vmem>>, vector<8x128xf32>
      %33 = arith.truncf %32 : vector<8x128xf32> to vector<8x128xbf16>
      %c0_30 = arith.constant 0 : index
      %c0_31 = arith.constant 0 : index
      %34 = vector.load %arg3[%c0_30, %c0_31] : memref<128x512xbf16, #tpu.memory_space<vmem>>, vector<128x512xbf16>
      %cst_32 = arith.constant dense<0.000000e+00> : vector<8x512xf32>
      %35 = tpu.matmul %33, %34, %cst_32 {dimension_numbers = #tpu.dot_dimension_numbers<[1], [0], [0], [1], [0, 0, 1, 1], [], []>} : vector<8x128xbf16>, vector<128x512xbf16>, vector<8x512xf32> -> vector<8x512xf32>
      %c0_33 = arith.constant 0 : index
      %c0_34 = arith.constant 0 : index
      %36 = vector.load %arg8[%c0_33, %c0_34] : memref<8x128xf32, #tpu.memory_space<vmem>>, vector<8x128xf32>
      %37 = arith.truncf %36 : vector<8x128xf32> to vector<8x128xbf16>
      %c0_35 = arith.constant 0 : index
      %c0_36 = arith.constant 0 : index
      %38 = vector.load %arg4[%c0_35, %c0_36] : memref<128x512xbf16, #tpu.memory_space<vmem>>, vector<128x512xbf16>
      %cst_37 = arith.constant dense<0.000000e+00> : vector<8x512xf32>
      %39 = tpu.matmul %37, %38, %cst_37 {dimension_numbers = #tpu.dot_dimension_numbers<[1], [0], [0], [1], [0, 0, 1, 1], [], []>} : vector<8x128xbf16>, vector<128x512xbf16>, vector<8x512xf32> -> vector<8x512xf32>
      %40 = arith.addf %35, %39 : vector<8x512xf32>
      %c0_38 = arith.constant 0 : index
      %c0_39 = arith.constant 0 : index
      %41 = vector.load %arg5[%c0_38, %c0_39] : memref<1x512xf32, #tpu.memory_space<vmem>>, vector<1x512xf32>
      %42 = vector.broadcast %41 : vector<1x512xf32> to vector<8x512xf32>
      %43 = arith.addf %40, %42 : vector<8x512xf32>
      %44 = vector.extract_strided_slice %43 {offsets = [0, 0], sizes = [8, 128], strides = [1, 1]} : vector<8x512xf32> to vector<8x128xf32>
      %45 = arith.negf %44 : vector<8x128xf32>
      %46 = math.exp %45 : vector<8x128xf32>
      %cst_40 = arith.constant 1.000000e+00 : f32
      %47 = vector.broadcast %cst_40 : f32 to vector<8x128xf32>
      %48 = arith.addf %47, %46 : vector<8x128xf32>
      %49 = arith.divf %47, %48 : vector<8x128xf32>
      %50 = vector.extract_strided_slice %43 {offsets = [0, 128], sizes = [8, 128], strides = [1, 1]} : vector<8x512xf32> to vector<8x128xf32>
      %51 = arith.negf %50 : vector<8x128xf32>
      %52 = math.exp %51 : vector<8x128xf32>
      %cst_41 = arith.constant 1.000000e+00 : f32
      %53 = vector.broadcast %cst_41 : f32 to vector<8x128xf32>
      %54 = arith.addf %53, %52 : vector<8x128xf32>
      %55 = arith.divf %53, %54 : vector<8x128xf32>
      %56 = vector.extract_strided_slice %43 {offsets = [0, 256], sizes = [8, 128], strides = [1, 1]} : vector<8x512xf32> to vector<8x128xf32>
      %57 = math.tanh %56 : vector<8x128xf32>
      %58 = vector.extract_strided_slice %43 {offsets = [0, 384], sizes = [8, 128], strides = [1, 1]} : vector<8x512xf32> to vector<8x128xf32>
      %59 = arith.negf %58 : vector<8x128xf32>
      %60 = math.exp %59 : vector<8x128xf32>
      %cst_42 = arith.constant 1.000000e+00 : f32
      %61 = vector.broadcast %cst_42 : f32 to vector<8x128xf32>
      %62 = arith.addf %61, %60 : vector<8x128xf32>
      %63 = arith.divf %61, %62 : vector<8x128xf32>
      %c0_43 = arith.constant 0 : index
      %c0_44 = arith.constant 0 : index
      %64 = vector.load %arg9[%c0_43, %c0_44] : memref<8x128xf32, #tpu.memory_space<vmem>>, vector<8x128xf32>
      %65 = arith.mulf %55, %64 : vector<8x128xf32>
      %66 = arith.mulf %49, %57 : vector<8x128xf32>
      %67 = arith.addf %65, %66 : vector<8x128xf32>
      %68 = math.tanh %67 : vector<8x128xf32>
      %69 = arith.mulf %63, %68 : vector<8x128xf32>
      %c0_45 = arith.constant 0 : index
      %c0_46 = arith.constant 0 : index
      %70 = vector.load %arg11[%c0_45, %c0_46] : memref<8x128xf32, #tpu.memory_space<vmem>>, vector<8x128xf32>
      tpu.vector_store %arg11[%c0_45, %c0_46], %69 {strides = array<i32>} : memref<8x128xf32, #tpu.memory_space<vmem>>, vector<8x128xf32>,
      %c0_47 = arith.constant 0 : index
      %c0_48 = arith.constant 0 : index
      %71 = vector.load %arg12[%c0_47, %c0_48] : memref<8x128xf32, #tpu.memory_space<vmem>>, vector<8x128xf32>
      tpu.vector_store %arg12[%c0_47, %c0_48], %67 {strides = array<i32>} : memref<8x128xf32, #tpu.memory_space<vmem>>, vector<8x128xf32>,
      %72 = arith.truncf %69 : vector<8x128xf32> to vector<8x128xbf16>
      %c0_49 = arith.constant 0 : index
      %c0_50 = arith.constant 0 : index
      %73 = vector.load %arg14[%c0_49, %c0_50] : memref<8x128xbf16, #tpu.memory_space<vmem>>, vector<8x128xbf16>
      tpu.vector_store %arg14[%c0_49, %c0_50], %72 {strides = array<i32>} : memref<8x128xbf16, #tpu.memory_space<vmem>>, vector<8x128xbf16>,
    } else {
    }
    %c0 = arith.constant 0 : index
    %c0_1 = arith.constant 0 : index
    %3 = vector.load %arg14[%c0, %c0_1] : memref<8x128xbf16, #tpu.memory_space<vmem>>, vector<8x128xbf16>
    %c0_2 = arith.constant 0 : index
    %c0_3 = arith.constant 0 : index
    %4 = vector.load %arg6[%c0_2, %c0_3] : memref<128x256xbf16, #tpu.memory_space<vmem>>, vector<128x256xbf16>
    %cst = arith.constant dense<0.000000e+00> : vector<8x256xf32>
    %5 = tpu.matmul %3, %4, %cst {dimension_numbers = #tpu.dot_dimension_numbers<[1], [0], [0], [1], [0, 0, 1, 1], [], []>} : vector<8x128xbf16>, vector<128x256xbf16>, vector<8x256xf32> -> vector<8x256xf32>
    %c0_4 = arith.constant 0 : index
    %c0_5 = arith.constant 0 : index
    %6 = vector.load %arg7[%c0_4, %c0_5] : memref<1x256xf32, #tpu.memory_space<vmem>>, vector<1x256xf32>
    %7 = vector.broadcast %6 : vector<1x256xf32> to vector<8x256xf32>
    %8 = arith.addf %5, %7 : vector<8x256xf32>
    %c0_6 = arith.constant 0 : index
    %c0_7 = arith.constant 0 : index
    %9 = vector.load %arg10[%c0_6, %c0_7] : memref<8x256xf32, #tpu.memory_space<vmem>>, vector<8x256xf32>
    tpu.vector_store %arg10[%c0_6, %c0_7], %8 {strides = array<i32>} : memref<8x256xf32, #tpu.memory_space<vmem>>, vector<8x256xf32>,
    return
  }
  func.func @transform_1(%arg0: i32, %arg1: memref<8xi32, #tpu.memory_space<smem>>) -> (i32, i32) {
    %c0_i32 = arith.constant 0 : i32
    %c0_i32_0 = arith.constant 0 : i32
    %c0_i32_1 = arith.constant 0 : i32
    return %c0_i32, %c0_i32_0 : i32, i32
  }
  func.func @transform_2(%arg0: i32, %arg1: memref<8xi32, #tpu.memory_space<smem>>) -> (i32, i32) {
    %c0_i32 = arith.constant 0 : i32
    %c0_i32_0 = arith.constant 0 : i32
    %c0_i32_1 = arith.constant 0 : i32
    return %c0_i32, %c0_i32_0 : i32, i32
  }
  func.func @transform_3(%arg0: i32, %arg1: memref<8xi32, #tpu.memory_space<smem>>) -> (i32, i32) {
    %c0_i32 = arith.constant 0 : i32
    %c0_i32_0 = arith.constant 0 : i32
    %c0_i32_1 = arith.constant 0 : i32
    return %c0_i32, %c0_i32_0 : i32, i32
  }
  func.func @transform_4(%arg0: i32, %arg1: memref<8xi32, #tpu.memory_space<smem>>) -> (i32, i32) {
    %c0_i32 = arith.constant 0 : i32
    %c0_i32_0 = arith.constant 0 : i32
    return %c0_i32, %arg0 : i32, i32
  }
  func.func @transform_5(%arg0: i32, %arg1: memref<8xi32, #tpu.memory_space<smem>>) -> (i32, i32) {
    %c0_i32 = arith.constant 0 : i32
    %c0_i32_0 = arith.constant 0 : i32
    return %c0_i32, %arg0 : i32, i32
  }
  func.func @transform_6(%arg0: i32, %arg1: memref<8xi32, #tpu.memory_space<smem>>) -> (i32, i32) {
    %c0_i32 = arith.constant 0 : i32
    %c0_i32_0 = arith.constant 0 : i32
    %c0_i32_1 = arith.constant 0 : i32
    return %c0_i32, %c0_i32_0 : i32, i32
  }
  func.func @transform_7(%arg0: i32, %arg1: memref<8xi32, #tpu.memory_space<smem>>) -> (i32, i32) {
    %c0_i32 = arith.constant 0 : i32
    %c0_i32_0 = arith.constant 0 : i32
    %c0_i32_1 = arith.constant 0 : i32
    return %c0_i32, %c0_i32_0 : i32, i32
  }
  func.func @transform_8(%arg0: i32, %arg1: memref<8xi32, #tpu.memory_space<smem>>) -> (i32, i32) {
    %c0_i32 = arith.constant 0 : i32
    %c0_i32_0 = arith.constant 0 : i32
    return %c0_i32, %arg0 : i32, i32
  }
  func.func @transform_9(%arg0: i32, %arg1: memref<8xi32, #tpu.memory_space<smem>>) -> (i32, i32) {
    %c0_i32 = arith.constant 0 : i32
    %c0_i32_0 = arith.constant 0 : i32
    %c0_i32_1 = arith.constant 0 : i32
    return %c0_i32, %c0_i32_0 : i32, i32
  }
  func.func @transform_10(%arg0: i32, %arg1: memref<8xi32, #tpu.memory_space<smem>>) -> (i32, i32) {
    %c0_i32 = arith.constant 0 : i32
    %c0_i32_0 = arith.constant 0 : i32
    %c0_i32_1 = arith.constant 0 : i32
    return %c0_i32, %c0_i32_0 : i32, i32
  }
}

</mosaic_0001>

<llo_original>
// kernel: language_decoder_forward.1
$region0: #{language_decoder_forward.1}
  #allocation0 [shape = 'u32[]', space=smem, size = 0x4, offset = 0x4, fixed_abs, tag = 'smem constant byte address 0x4 - core index']
  #allocation1 [shape = 'u32[144,128]{1,0:T(1,128)}', space=vmem, size = 0x12000, scoped, tag = 'internal scratch']
  #allocation2 [shape = 'f32[8,128]{1,0:T(8,128)}', space=vmem, size = 0x1000, scoped, tag = 'scratch operand']
  #allocation3 [shape = 'bf16[8,128]{1,0:T(8,128)(2,1)}', space=vmem, size = 0x800, scoped, tag = 'scratch operand']
  #allocation4 [shape = 's32[8]{0}', space=sflag, size = 0x20, scoped, tag = 'scratch operand']
  #allocation5 [shape = 's32[1]{0}', space=sflag, size = 0x4, scoped, tag = 'scoped memory for language_decoder_forward.1']
  #allocation6 [shape = 'u8[512]{0}', space=smem, size = 0x200, scoped, tag = 'prefetched SMEM operand 0']
  #allocation12 [shape = 's32[]', space=sflag, size = 0x4, offset = 0, fixed_abs, tag = 'sflag constant byte address 0x0 - dummy sync flag']
  #allocation13 [shape = 's32[]', space=sflag, size = 0x4, offset = 0, fixed_abs, tag = 'sflag constant byte address 0x0 - dummy sync flag']
  #allocation14 [shape = 'u32[]', space=smem, size = 0x4, offset = 0x44, fixed_abs, tag = 'smem constant byte address 0x44 - assertion arg 0']
  #allocation15 [shape = 'u32[]', space=smem, size = 0x4, offset = 0x48, fixed_abs, tag = 'smem constant byte address 0x48 - assertion arg 1']
  #allocation16 [shape = 's32[]', space=sflag, size = 0x4, offset = 0, fixed_abs, tag = 'sflag constant byte address 0x0 - dummy sync flag']
  #allocation17 [shape = 's32[]', space=sflag, size = 0x4, offset = 0, fixed_abs, tag = 'sflag constant byte address 0x0 - dummy sync flag']
  %s0 = inlined_call_operand.vmem [shape: s32[8], index: 0, kind: input, shape index: {}]
  %s1 = inlined_call_operand.hbm [shape: f32[512,128], index: 1, kind: input, shape index: {}]
  %s2 = inlined_call_operand.hbm [shape: bf16[128,512], index: 2, kind: input, shape index: {}]
  %s3 = inlined_call_operand.hbm [shape: bf16[128,512], index: 3, kind: input, shape index: {}]
  %s4 = inlined_call_operand.vmem [shape: f32[1,512], index: 4, kind: input, shape index: {}]
  %s5 = inlined_call_operand.hbm [shape: bf16[128,512], index: 5, kind: input, shape index: {}]
  %s6 = inlined_call_operand.vmem [shape: f32[1,512], index: 6, kind: input, shape index: {}]
  %s7 = inlined_call_operand.vmem [shape: f32[8,128], index: 7, kind: input, shape index: {}]
  %s8 = inlined_call_operand.vmem [shape: f32[8,128], index: 8, kind: input, shape index: {}]
  %s9 = inlined_call_operand.vmem [shape: f32[8,512], index: 9, kind: output, shape index: {0}]
  %s10 = inlined_call_operand.vmem [shape: f32[8,128], index: 10, kind: output, shape index: {1}]
  %s11 = inlined_call_operand.vmem [shape: f32[8,128], index: 11, kind: output, shape index: {2}]
  %12 = xla_tuple %s9, %s10, %s11
  %s13 = sld [smem:[#allocation0]]
  $region101: #{language_decoder_forward.1} parent=0
    _
  %s15 = ssub.s32 1, %s13
  %s16 = scalar_select 0, %s15, %s13
  %s17 = sshll.u32 %s0, 4
  %s18 = int_to_ptr.vmem [resolvable:$true] %s17
  %20 = dma.vmem_to_smem %s18, 16, [#allocation6], [#allocation5]
  %21 = dma.done [#allocation5], 16
  %22 = sfence
  $region1: #{language_decoder_forward.1} parent=0
    #allocation7 [shape = 'u8[131072]{0}', space=vmem, size = 0x20000, scoped, tag = 'input window, operand 2, single buffered']
    #allocation8 [shape = 's32[2]{0}', space=sflag, size = 0x8, scoped, tag = 'scoped memory for language_decoder_forward.1']
    #allocation9 [shape = 'u8[131072]{0}', space=vmem, size = 0x20000, scoped, tag = 'input window, operand 3, single buffered']
    #allocation10 [shape = 's32[1]{0}', space=sflag, size = 0x4, scoped, tag = 'scoped memory for language_decoder_forward.1']
    #allocation11 [shape = 'u8[131072]{0}', space=vmem, size = 0x20000, scoped, tag = 'input window, operand 5']
    %23 = vsyncpa [#allocation8], 0
    %24 = vsyncpa [#allocation10], 0
    loop: start=0, step=1, limit=4
    $region2: #{language_decoder_forward.1} parent=1 // loop_pre_header
      _
    $region3: #{language_decoder_forward.1} parent=1 // loop_header
      %s26 = sphi 0, %s30
      %p27 = scmp.ge.s32.totalorder %s26, 4
      %s34 = sphi 0, %s34
      %s36 = sphi 0, %s34
      %s37 = sphi 0, %s36
      %s51 = sphi 0, %s37
      %s55 = sphi 0, %s55
      %s57 = sphi 0, %s55
      %s58 = sphi 0, %s57
      %s72 = sphi 0, %s58
      %s76 = sphi 0, %s76
      %s78 = sphi 0, %s76
      %s79 = sphi 0, %s78
      %s93 = sphi 0, %s79
      %s99 = sphi 0, %s101
      %s102 = sphi 0, %s99
      %s103 = sphi 0, %s102
      %s119 = sphi 0, %s103
      %s125 = sphi 0, %s127
      %s128 = sphi 0, %s125
      %s129 = sphi 0, %s128
      %s145 = sphi 0, %s129
      %s149 = sphi 0, %s149
      %s151 = sphi 0, %s149
      %s152 = sphi 0, %s151
      %s166 = sphi 0, %s152
      %s170 = sphi 0, %s170
      %s172 = sphi 0, %s170
      %s173 = sphi 0, %s172
      %s187 = sphi 0, %s173
      %s193 = sphi 0, %s195
      %s196 = sphi 0, %s193
      %s197 = sphi 0, %s196
      %s213 = sphi 0, %s197
      %s217 = sphi 0, %s217
      %s219 = sphi 0, %s217
      %s220 = sphi 0, %s219
      %s234 = sphi 0, %s220
      %s238 = sphi 0, %s238
      %s240 = sphi 0, %s238
      %s241 = sphi 0, %s240
      %s255 = sphi 0, %s241
    $region4: #{language_decoder_forward.1} parent=1 // loop_header_branch
      %29 = sbr.rel (%p27) target = $region8
    $region5: #{language_decoder_forward.1} parent=1 // loop_body
      %s31 = ssub.s32 %s26, 1
      %s32 = ssub.s32 %s26, 2
      %s33 = sadd.s32 %s26, 1
      %s35 = sadd.s32 %s34, 1
      %p38 = scmp.eq.s32.totalorder %s26, 1
      %p39 = scmp.ne.s32.totalorder %s34, %s36
      %p40 = scmp.eq.s32.totalorder %s26, 0
      %p41 = por %p39, %p40
      %p42 = scmp.ne.s32.totalorder %s34, %s36
      %p43 = scmp.eq.s32.totalorder %s31, 1
      %p44 = por %p42, %p43
      %p45 = scmp.ne.s32.totalorder %s36, %s37
      %p46 = scmp.eq.s32.totalorder %s31, 0
      %p47 = por %p45, %p46
      %p48 = scmp.ne.s32.totalorder %s36, %s37
      %p49 = scmp.eq.s32.totalorder %s32, 1
      %p50 = por %p48, %p49
      %p52 = scmp.ne.s32.totalorder %s37, %s51
      %p53 = scmp.eq.s32.totalorder %s32, 0
      %p54 = por %p52, %p53
      %s56 = sadd.s32 %s55, 1
      %p59 = scmp.eq.s32.totalorder %s26, 1
      %p60 = scmp.ne.s32.totalorder %s55, %s57
      %p61 = scmp.eq.s32.totalorder %s26, 0
      %p62 = por %p60, %p61
      %p63 = scmp.ne.s32.totalorder %s55, %s57
      %p64 = scmp.eq.s32.totalorder %s31, 1
      %p65 = por %p63, %p64
      %p66 = scmp.ne.s32.totalorder %s57, %s58
      %p67 = scmp.eq.s32.totalorder %s31, 0
      %p68 = por %p66, %p67
      %p69 = scmp.ne.s32.totalorder %s57, %s58
      %p70 = scmp.eq.s32.totalorder %s32, 1
      %p71 = por %p69, %p70
      %p73 = scmp.ne.s32.totalorder %s58, %s72
      %p74 = scmp.eq.s32.totalorder %s32, 0
      %p75 = por %p73, %p74
      %s77 = sadd.s32 %s76, 1
      %p80 = scmp.eq.s32.totalorder %s26, 1
      %p81 = scmp.ne.s32.totalorder %s76, %s78
      %p82 = scmp.eq.s32.totalorder %s26, 0
      %p83 = por %p81, %p82
      %p84 = scmp.ne.s32.totalorder %s76, %s78
      %p85 = scmp.eq.s32.totalorder %s31, 1
      %p86 = por %p84, %p85
      %p87 = scmp.ne.s32.totalorder %s78, %s79
      %p88 = scmp.eq.s32.totalorder %s31, 0
      %p89 = por %p87, %p88
      %p90 = scmp.ne.s32.totalorder %s78, %s79
      %p91 = scmp.eq.s32.totalorder %s32, 1
      %p92 = por %p90, %p91
      %p94 = scmp.ne.s32.totalorder %s79, %s93
      %p95 = scmp.eq.s32.totalorder %s32, 0
      %p96 = por %p94, %p95
      %s97 = ssub.s32 %s26, %s33
      %p98 = scmp.eq.s32.totalorder %s97, 0
      %s100 = sadd.s32 %s99, 1
      %s101 = scalar_select %p98, %s99, %s100
      %p104 = pneg %p98
      %p105 = scmp.eq.s32.totalorder %s26, 1
      %p106 = por %p104, %p105
      %p107 = scmp.ne.s32.totalorder %s99, %s102
      %p108 = scmp.eq.s32.totalorder %s26, 0
      %p109 = por %p107, %p108
      %p110 = scmp.ne.s32.totalorder %s99, %s102
      %p111 = scmp.eq.s32.totalorder %s31, 1
      %p112 = por %p110, %p111
      %p113 = scmp.ne.s32.totalorder %s102, %s103
      %p114 = scmp.eq.s32.totalorder %s31, 0
      %p115 = por %p113, %p114
      %p116 = scmp.ne.s32.totalorder %s102, %s103
      %p117 = scmp.eq.s32.totalorder %s32, 1
      %p118 = por %p116, %p117
      %p120 = scmp.ne.s32.totalorder %s103, %s119
      %p121 = scmp.eq.s32.totalorder %s32, 0
      %p122 = por %p120, %p121
      %s123 = ssub.s32 %s26, %s33
      %p124 = scmp.eq.s32.totalorder %s123, 0
      %s126 = sadd.s32 %s125, 1
      %s127 = scalar_select %p124, %s125, %s126
      %p130 = pneg %p124
      %p131 = scmp.eq.s32.totalorder %s26, 1
      %p132 = por %p130, %p131
      %p133 = scmp.ne.s32.totalorder %s125, %s128
      %p134 = scmp.eq.s32.totalorder %s26, 0
      %p135 = por %p133, %p134
      %p136 = scmp.ne.s32.totalorder %s125, %s128
      %p137 = scmp.eq.s32.totalorder %s31, 1
      %p138 = por %p136, %p137
      %p139 = scmp.ne.s32.totalorder %s128, %s129
      %p140 = scmp.eq.s32.totalorder %s31, 0
      %p141 = por %p139, %p140
      %p142 = scmp.ne.s32.totalorder %s128, %s129
      %p143 = scmp.eq.s32.totalorder %s32, 1
      %p144 = por %p142, %p143
      %p146 = scmp.ne.s32.totalorder %s129, %s145
      %p147 = scmp.eq.s32.totalorder %s32, 0
      %p148 = por %p146, %p147
      %s150 = sadd.s32 %s149, 1
      %p153 = scmp.eq.s32.totalorder %s26, 1
      %p154 = scmp.ne.s32.totalorder %s149, %s151
      %p155 = scmp.eq.s32.totalorder %s26, 0
      %p156 = por %p154, %p155
      %p157 = scmp.ne.s32.totalorder %s149, %s151
      %p158 = scmp.eq.s32.totalorder %s31, 1
      %p159 = por %p157, %p158
      %p160 = scmp.ne.s32.totalorder %s151, %s152
      %p161 = scmp.eq.s32.totalorder %s31, 0
      %p162 = por %p160, %p161
      %p163 = scmp.ne.s32.totalorder %s151, %s152
      %p164 = scmp.eq.s32.totalorder %s32, 1
      %p165 = por %p163, %p164
      %p167 = scmp.ne.s32.totalorder %s152, %s166
      %p168 = scmp.eq.s32.totalorder %s32, 0
      %p169 = por %p167, %p168
      %s171 = sadd.s32 %s170, 1
      %p174 = scmp.eq.s32.totalorder %s26, 1
      %p175 = scmp.ne.s32.totalorder %s170, %s172
      %p176 = scmp.eq.s32.totalorder %s26, 0
      %p177 = por %p175, %p176
      %p178 = scmp.ne.s32.totalorder %s170, %s172
      %p179 = scmp.eq.s32.totalorder %s31, 1
      %p180 = por %p178, %p179
      %p181 = scmp.ne.s32.totalorder %s172, %s173
      %p182 = scmp.eq.s32.totalorder %s31, 0
      %p183 = por %p181, %p182
      %p184 = scmp.ne.s32.totalorder %s172, %s173
      %p185 = scmp.eq.s32.totalorder %s32, 1
      %p186 = por %p184, %p185
      %p188 = scmp.ne.s32.totalorder %s173, %s187
      %p189 = scmp.eq.s32.totalorder %s32, 0
      %p190 = por %p188, %p189
      %s191 = ssub.s32 %s26, %s33
      %p192 = scmp.eq.s32.totalorder %s191, 0
      %s194 = sadd.s32 %s193, 1
      %s195 = scalar_select %p192, %s193, %s194
      %p198 = pneg %p192
      %p199 = scmp.eq.s32.totalorder %s26, 1
      %p200 = por %p198, %p199
      %p201 = scmp.ne.s32.totalorder %s193, %s196
      %p202 = scmp.eq.s32.totalorder %s26, 0
      %p203 = por %p201, %p202
      %p204 = scmp.ne.s32.totalorder %s193, %s196
      %p205 = scmp.eq.s32.totalorder %s31, 1
      %p206 = por %p204, %p205
      %p207 = scmp.ne.s32.totalorder %s196, %s197
      %p208 = scmp.eq.s32.totalorder %s31, 0
      %p209 = por %p207, %p208
      %p210 = scmp.ne.s32.totalorder %s196, %s197
      %p211 = scmp.eq.s32.totalorder %s32, 1
      %p212 = por %p210, %p211
      %p214 = scmp.ne.s32.totalorder %s197, %s213
      %p215 = scmp.eq.s32.totalorder %s32, 0
      %p216 = por %p214, %p215
      %s218 = sadd.s32 %s217, 1
      %p221 = scmp.eq.s32.totalorder %s26, 1
      %p222 = scmp.ne.s32.totalorder %s217, %s219
      %p223 = scmp.eq.s32.totalorder %s26, 0
      %p224 = por %p222, %p223
      %p225 = scmp.ne.s32.totalorder %s217, %s219
      %p226 = scmp.eq.s32.totalorder %s31, 1
      %p227 = por %p225, %p226
      %p228 = scmp.ne.s32.totalorder %s219, %s220
      %p229 = scmp.eq.s32.totalorder %s31, 0
      %p230 = por %p228, %p229
      %p231 = scmp.ne.s32.totalorder %s219, %s220
      %p232 = scmp.eq.s32.totalorder %s32, 1
      %p233 = por %p231, %p232
      %p235 = scmp.ne.s32.totalorder %s220, %s234
      %p236 = scmp.eq.s32.totalorder %s32, 0
      %p237 = por %p235, %p236
      %s239 = sadd.s32 %s238, 1
      %p242 = scmp.eq.s32.totalorder %s26, 1
      %p243 = scmp.ne.s32.totalorder %s238, %s240
      %p244 = scmp.eq.s32.totalorder %s26, 0
      %p245 = por %p243, %p244
      %p246 = scmp.ne.s32.totalorder %s238, %s240
      %p247 = scmp.eq.s32.totalorder %s31, 1
      %p248 = por %p246, %p247
      %p249 = scmp.ne.s32.totalorder %s240, %s241
      %p250 = scmp.eq.s32.totalorder %s31, 0
      %p251 = por %p249, %p250
      %p252 = scmp.ne.s32.totalorder %s240, %s241
      %p253 = scmp.eq.s32.totalorder %s32, 1
      %p254 = por %p252, %p253
      %p256 = scmp.ne.s32.totalorder %s241, %s255
      %p257 = scmp.eq.s32.totalorder %s32, 0
      %p258 = por %p256, %p257
      %p259 = scmp.le.s32.totalorder 1, %s26
      %p260 = scmp.lt.s32.totalorder %s26, 3
      %p261 = pnand %p259, %p260
      %p262 = pneg %p261
      // Predicated region
      $region9: #{language_decoder_forward.1} parent=5 // pred_check
        _
      $region10: #{language_decoder_forward.1} parent=5 // pred_check_branch
        %264 = sbr.rel (%p261) target = $region12
      $region11: #{language_decoder_forward.1} parent=5 // pred_region
        %s265 = ssub.s32 %s26, 1
        // Predicated region
        $region13: #{language_decoder_forward.1} parent=11 // pred_check
          %p266 = pneg %p47
        $region14: #{language_decoder_forward.1} parent=11 // pred_check_branch
          %268 = sbr.rel (%p266) target = $region16
        $region15: #{language_decoder_forward.1} parent=11 // pred_region
          %s270 = ssub.s32 4096, 4096
          %271 = vsyncadd [#allocation8], %s270
          %s272 = sshll.u32 [#allocation7], 4
          %s273 = int_to_ptr.vmem [resolvable:$true] %s272
          %278 = dma.hbm_to_vmem [thread:$0]  %s2, 4096, %s273, [#allocation8], 256, 256, 16
        $region16: #{language_decoder_forward.1} parent=11 // pred_fallthru
          _
        // Predicated region
        $region17: #{language_decoder_forward.1} parent=11 // pred_check
          %p279 = pneg %p68
        $region18: #{language_decoder_forward.1} parent=11 // pred_check_branch
          %281 = sbr.rel (%p279) target = $region20
        $region19: #{language_decoder_forward.1} parent=11 // pred_region
          %s283 = ssub.s32 4096, 4096
          %284 = vsyncadd [#allocation10], %s283
          %s285 = sshll.u32 [#allocation9], 4
          %s286 = int_to_ptr.vmem [resolvable:$true] %s285
          %291 = dma.hbm_to_vmem [thread:$0]  %s3, 4096, %s286, [#allocation10], 256, 256, 16
        $region20: #{language_decoder_forward.1} parent=11 // pred_fallthru
          _
        // Predicated region
        $region21: #{language_decoder_forward.1} parent=11 // pred_check
          %p292 = pneg %p89
        $region22: #{language_decoder_forward.1} parent=11 // pred_check_branch
          %294 = sbr.rel (%p292) target = $region24
        $region23: #{language_decoder_forward.1} parent=11 // pred_region
          _
        $region24: #{language_decoder_forward.1} parent=11 // pred_fallthru
          _
        // Predicated region
        $region25: #{language_decoder_forward.1} parent=11 // pred_check
          %p295 = pneg %p162
        $region26: #{language_decoder_forward.1} parent=11 // pred_check_branch
          %297 = sbr.rel (%p295) target = $region28
        $region27: #{language_decoder_forward.1} parent=11 // pred_region
          _
        $region28: #{language_decoder_forward.1} parent=11 // pred_fallthru
          _
        // Predicated region
        $region29: #{language_decoder_forward.1} parent=11 // pred_check
          %p298 = pneg %p183
        $region30: #{language_decoder_forward.1} parent=11 // pred_check_branch
          %300 = sbr.rel (%p298) target = $region32
        $region31: #{language_decoder_forward.1} parent=11 // pred_region
          _
        $region32: #{language_decoder_forward.1} parent=11 // pred_fallthru
          _
      $region12: #{language_decoder_forward.1} parent=5 // pred_fallthru
        _
      %p301 = scmp.lt.s32.totalorder %s26, 2
      // Predicated region
      $region33: #{language_decoder_forward.1} parent=5 // pred_check
        %p302 = pneg %p301
      $region34: #{language_decoder_forward.1} parent=5 // pred_check_branch
        %304 = sbr.rel (%p302) target = $region36
      $region35: #{language_decoder_forward.1} parent=5 // pred_region
        // Predicated region
        $region37: #{language_decoder_forward.1} parent=35 // pred_check
          %p305 = pneg %p109
        $region38: #{language_decoder_forward.1} parent=35 // pred_check_branch
          %307 = sbr.rel (%p305) target = $region40
        $region39: #{language_decoder_forward.1} parent=35 // pred_region
          %s308 = sand.u32 %s26, 1
          %s309 = scalar_lea.sflag [#allocation8], %s308
          %s310 = sand.u32 %s99, 1
          %s311 = smul.addr %s310, 128
          %s312 = scalar_lea.vmem [#allocation11], %s311
          %s313 = smul.u32 2, %s26
          %s315 = ssub.s32 2048, 2048
          %316 = vsyncadd %s309, %s315
          %s317 = smul.addr %s313, 64
          %s318 = scalar_lea.hbm %s5, %s317
          %s319 = sshll.u32 %s312, 4
          %s320 = int_to_ptr.vmem [resolvable:$true] %s319
          %325 = dma.hbm_to_vmem [thread:$0]  %s318, 2048, %s320, %s309, 256, 128, 8
        $region40: #{language_decoder_forward.1} parent=35 // pred_fallthru
          _
        // Predicated region
        $region41: #{language_decoder_forward.1} parent=35 // pred_check
          %p326 = pneg %p135
        $region42: #{language_decoder_forward.1} parent=35 // pred_check_branch
          %328 = sbr.rel (%p326) target = $region44
        $region43: #{language_decoder_forward.1} parent=35 // pred_region
          %s329 = smul.u32 2, %s26
          %p330 = scmp.lt.s32.totalorder %s329, 3
          %s331 = scalar_select %p330, %s329, 3
          %s332 = scalar_lea.vmem %s6, %s331
          %s333 = smul.u32 2, %s26
        $region44: #{language_decoder_forward.1} parent=35 // pred_fallthru
          _
      $region36: #{language_decoder_forward.1} parent=5 // pred_fallthru
        _
      %p334 = scmp.le.s32.totalorder 1, %s26
      %p335 = scmp.lt.s32.totalorder %s26, 3
      %p336 = pnand %p334, %p335
      %p337 = pneg %p336
      // Predicated region
      $region45: #{language_decoder_forward.1} parent=5 // pred_check
        _
      $region46: #{language_decoder_forward.1} parent=5 // pred_check_branch
        %339 = sbr.rel (%p336) target = $region48
      $region47: #{language_decoder_forward.1} parent=5 // pred_region
        %s340 = ssub.s32 %s26, 1
        // Predicated region
        $region49: #{language_decoder_forward.1} parent=47 // pred_check
          %p341 = pneg %p47
        $region50: #{language_decoder_forward.1} parent=47 // pred_check_branch
          %343 = sbr.rel (%p341) target = $region52
        $region51: #{language_decoder_forward.1} parent=47 // pred_region
          %344 = dma.done [#allocation8], 4096
        $region52: #{language_decoder_forward.1} parent=47 // pred_fallthru
          _
        // Predicated region
        $region53: #{language_decoder_forward.1} parent=47 // pred_check
          %p345 = pneg %p68
        $region54: #{language_decoder_forward.1} parent=47 // pred_check_branch
          %347 = sbr.rel (%p345) target = $region56
        $region55: #{language_decoder_forward.1} parent=47 // pred_region
          %348 = dma.done [#allocation10], 4096
        $region56: #{language_decoder_forward.1} parent=47 // pred_fallthru
          _
        %s349 = sand.u32 %s31, 1
        %s350 = scalar_lea.sflag [#allocation8], %s349
        %s351 = sand.u32 %s102, 1
        %s352 = smul.addr %s351, 128
        %s353 = scalar_lea.vmem [#allocation11], %s352
        // Predicated region
        $region57: #{language_decoder_forward.1} parent=47 // pred_check
          %p354 = pneg %p115
        $region58: #{language_decoder_forward.1} parent=47 // pred_check_branch
          %356 = sbr.rel (%p354) target = $region60
        $region59: #{language_decoder_forward.1} parent=47 // pred_region
          %357 = dma.done %s350, 2048
        $region60: #{language_decoder_forward.1} parent=47 // pred_fallthru
          _
        %p358 = pneg %p47
        %p359 = pneg %p44
        %p360 = pneg %p68
        %p361 = pneg %p65
        %p362 = pneg %p89
        %p363 = pneg %p86
        %s364 = sand.u32 %s31, 1
        %s365 = scalar_lea.sflag [#allocation8], %s364
        %s366 = sand.u32 %s102, 1
        %s367 = smul.addr %s366, 128
        %s368 = scalar_lea.vmem [#allocation11], %s367
        %p369 = pneg %p115
        %p370 = pneg %p112
        %s371 = smul.u32 2, %s31
        %p372 = scmp.lt.s32.totalorder %s371, 3
        %s373 = scalar_select %p372, %s371, 3
        %s374 = scalar_lea.vmem %s6, %s373
        %p375 = pneg %p141
        %p376 = pneg %p138
        %p377 = pneg %p162
        %p378 = pneg %p159
        %p379 = pneg %p183
        %p380 = pneg %p180
        %p381 = pneg %p209
        %p382 = pneg %p206
        %s383 = smul.u32 2, %s31
        %p384 = scmp.lt.s32.totalorder %s383, 3
        %s385 = scalar_select %p384, %s383, 3
        %s386 = smul.addr %s385, 8
        %s387 = scalar_lea.vmem %s9, %s386
        %p388 = pneg %p230
        %p389 = pneg %p227
        %p390 = pneg %p251
        %p391 = pneg %p248
        %s392 = smul.u32 2, %s31
        %s393 = smul.u32 2, %s31
        %p394 = scmp.lt.s32.totalorder %s393, 3
        %s395 = scalar_select %p394, %s393, 3
        %s396 = scalar_lea.vmem %s6, %s395
        %s397 = smul.u32 2, %s31
        %s398 = smul.u32 2, %s31
        %p399 = scmp.lt.s32.totalorder %s398, 3
        %s400 = scalar_select %p399, %s398, 3
        %s401 = smul.addr %s400, 8
        %s402 = scalar_lea.vmem %s9, %s401
        %s403 = smul.u32 2, %s31
        %p405 = scmp.eq.s32.totalorder %s31, 0
        // Predicated region
        $region61: #{language_decoder_forward.1} parent=47 // pred_check
          %p406 = pneg %p405
        $region62: #{language_decoder_forward.1} parent=47 // pred_check_branch
          %408 = sbr.rel (%p406) target = $region64
        $region63: #{language_decoder_forward.1} parent=47 // pred_region
          %s409 = sld [smem:[#allocation6]]
          %s410 = smul.addr %s409, 16
          %s411 = scalar_lea.hbm %s1, %s410
          // Predicated region
          $region65: #{language_decoder_forward.1} parent=63 // pred_check
            _
          $region66: #{language_decoder_forward.1} parent=63 // pred_check_branch
            %413 = sbr.rel target = $region68
          $region67: #{language_decoder_forward.1} parent=63 // pred_region
            %414 = sst [smem:[#allocation14]] [#allocation13]
            %415 = sst [smem:[#allocation15]] [#allocation12]
          $region68: #{language_decoder_forward.1} parent=63 // pred_fallthru
            _
          %417 = shalt.err (0)
          %s419 = sshll.u32 [#allocation2], 4
          %s420 = int_to_ptr.vmem [resolvable:$true] %s419
          %422 = dma.hbm_to_vmem [thread:$0]  %s411, 16, %s420, [#allocation4]
          %s423 = sld [smem:[#allocation6 + $0x1]]
          %s424 = smul.addr %s423, 16
          %s425 = scalar_lea.hbm %s1, %s424
          %s426 = scalar_lea.vmem [#allocation2], 1
          %s427 = scalar_lea.sflag [#allocation4], 1
          // Predicated region
          $region69: #{language_decoder_forward.1} parent=63 // pred_check
            _
          $region70: #{language_decoder_forward.1} parent=63 // pred_check_branch
            %429 = sbr.rel target = $region72
          $region71: #{language_decoder_forward.1} parent=63 // pred_region
            %430 = sst [smem:[#allocation14]] [#allocation17]
            %431 = sst [smem:[#allocation15]] [#allocation16]
          $region72: #{language_decoder_forward.1} parent=63 // pred_fallthru
            _
          %433 = shalt.err (0)
          %s435 = sshll.u32 %s426, 4
          %s436 = int_to_ptr.vmem [resolvable:$true] %s435
          %438 = dma.hbm_to_vmem [thread:$0]  %s425, 16, %s436, %s427
          %s439 = sld [smem:[#allocation6]]
          %s440 = smul.u32 1, 1
          %s441 = sshll.u32 %s440, 4
          %442 = dma.done [#allocation4], %s441
          %s443 = sld [smem:[#allocation6 + $0x1]]
          %s444 = sshll.u32 %s440, 4
          %445 = dma.done %s427, %s444
          %446 = vst [vmem:[#allocation2 + $0x2] sm:$0x3f] 0.0
          %v447 = vld [vmem:[#allocation2] sm:$0xff]
          %v448 = vpack.c.bf16 %v447, %v447
          %v449 = vld [vmem:[#allocation7] sm:$0xff]
          %v450 = vld [vmem:[#allocation7 + $0x8] sm:$0xff]
          %v451 = vld [vmem:[#allocation7 + $0x10] sm:$0xff]
          %v452 = vld [vmem:[#allocation7 + $0x18] sm:$0xff]
          %v453 = vld [vmem:[#allocation7 + $0x20] sm:$0xff]
          %v454 = vld [vmem:[#allocation7 + $0x28] sm:$0xff]
          %v455 = vld [vmem:[#allocation7 + $0x30] sm:$0xff]
          %v456 = vld [vmem:[#allocation7 + $0x38] sm:$0xff]
          %v457 = vld [vmem:[#allocation7 + $0x40] sm:$0xff]
          %v458 = vld [vmem:[#allocation7 + $0x48] sm:$0xff]
          %v459 = vld [vmem:[#allocation7 + $0x50] sm:$0xff]
          %v460 = vld [vmem:[#allocation7 + $0x58] sm:$0xff]
          %v461 = vld [vmem:[#allocation7 + $0x60] sm:$0xff]
          %v462 = vld [vmem:[#allocation7 + $0x68] sm:$0xff]
          %v463 = vld [vmem:[#allocation7 + $0x70] sm:$0xff]
          %v464 = vld [vmem:[#allocation7 + $0x78] sm:$0xff]
          %v465 = vld [vmem:[#allocation7 + $0x80] sm:$0xff]
          %v466 = vld [vmem:[#allocation7 + $0x88] sm:$0xff]
          %v467 = vld [vmem:[#allocation7 + $0x90] sm:$0xff]
          %v468 = vld [vmem:[#allocation7 + $0x98] sm:$0xff]
          %v469 = vld [vmem:[#allocation7 + $0xa0] sm:$0xff]
          %v470 = vld [vmem:[#allocation7 + $0xa8] sm:$0xff]
          %v471 = vld [vmem:[#allocation7 + $0xb0] sm:$0xff]
          %v472 = vld [vmem:[#allocation7 + $0xb8] sm:$0xff]
          %v473 = vld [vmem:[#allocation7 + $0xc0] sm:$0xff]
          %v474 = vld [vmem:[#allocation7 + $0xc8] sm:$0xff]
          %v475 = vld [vmem:[#allocation7 + $0xd0] sm:$0xff]
          %v476 = vld [vmem:[#allocation7 + $0xd8] sm:$0xff]
          %v477 = vld [vmem:[#allocation7 + $0xe0] sm:$0xff]
          %v478 = vld [vmem:[#allocation7 + $0xe8] sm:$0xff]
          %v479 = vld [vmem:[#allocation7 + $0xf0] sm:$0xff]
          %v480 = vld [vmem:[#allocation7 + $0xf8] sm:$0xff]
          %v481 = vld [vmem:[%s7] sm:$0xff]
          %v482 = vpack.c.bf16 %v481, %v481
          %v483 = vld [vmem:[#allocation9] sm:$0xff]
          %v484 = vld [vmem:[#allocation9 + $0x8] sm:$0xff]
          %v485 = vld [vmem:[#allocation9 + $0x10] sm:$0xff]
          %v486 = vld [vmem:[#allocation9 + $0x18] sm:$0xff]
          %v487 = vld [vmem:[#allocation9 + $0x20] sm:$0xff]
          %v488 = vld [vmem:[#allocation9 + $0x28] sm:$0xff]
          %v489 = vld [vmem:[#allocation9 + $0x30] sm:$0xff]
          %v490 = vld [vmem:[#allocation9 + $0x38] sm:$0xff]
          %v491 = vld [vmem:[#allocation9 + $0x40] sm:$0xff]
          %v492 = vld [vmem:[#allocation9 + $0x48] sm:$0xff]
          %v493 = vld [vmem:[#allocation9 + $0x50] sm:$0xff]
          %v494 = vld [vmem:[#allocation9 + $0x58] sm:$0xff]
          %v495 = vld [vmem:[#allocation9 + $0x60] sm:$0xff]
          %v496 = vld [vmem:[#allocation9 + $0x68] sm:$0xff]
          %v497 = vld [vmem:[#allocation9 + $0x70] sm:$0xff]
          %v498 = vld [vmem:[#allocation9 + $0x78] sm:$0xff]
          %v499 = vld [vmem:[#allocation9 + $0x80] sm:$0xff]
          %v500 = vld [vmem:[#allocation9 + $0x88] sm:$0xff]
          %v501 = vld [vmem:[#allocation9 + $0x90] sm:$0xff]
          %v502 = vld [vmem:[#allocation9 + $0x98] sm:$0xff]
          %v503 = vld [vmem:[#allocation9 + $0xa0] sm:$0xff]
          %v504 = vld [vmem:[#allocation9 + $0xa8] sm:$0xff]
          %v505 = vld [vmem:[#allocation9 + $0xb0] sm:$0xff]
          %v506 = vld [vmem:[#allocation9 + $0xb8] sm:$0xff]
          %v507 = vld [vmem:[#allocation9 + $0xc0] sm:$0xff]
          %v508 = vld [vmem:[#allocation9 + $0xc8] sm:$0xff]
          %v509 = vld [vmem:[#allocation9 + $0xd0] sm:$0xff]
          %v510 = vld [vmem:[#allocation9 + $0xd8] sm:$0xff]
          %v511 = vld [vmem:[#allocation9 + $0xe0] sm:$0xff]
          %v512 = vld [vmem:[#allocation9 + $0xe8] sm:$0xff]
          %v513 = vld [vmem:[#allocation9 + $0xf0] sm:$0xff]
          %v514 = vld [vmem:[#allocation9 + $0xf8] sm:$0xff]
          %v547 = vunpack.c.l.b16 %v483
          %v548 = vunpack.c.h.b16 %v483
          %v549 = vunpack.c.l.b16 %v484
          %v550 = vunpack.c.h.b16 %v484
          %v551 = vunpack.c.l.b16 %v485
          %v552 = vunpack.c.h.b16 %v485
          %v553 = vunpack.c.l.b16 %v486
          %v554 = vunpack.c.h.b16 %v486
          %v555 = vunpack.c.l.b16 %v487
          %v556 = vunpack.c.h.b16 %v487
          %v557 = vunpack.c.l.b16 %v488
          %v558 = vunpack.c.h.b16 %v488
          %v559 = vunpack.c.l.b16 %v489
          %v560 = vunpack.c.h.b16 %v489
          %v561 = vunpack.c.l.b16 %v490
          %v562 = vunpack.c.h.b16 %v490
          %v563 = vunpack.c.l.b16 %v491
          %v564 = vunpack.c.h.b16 %v491
          %v565 = vunpack.c.l.b16 %v492
          %v566 = vunpack.c.h.b16 %v492
          %v567 = vunpack.c.l.b16 %v493
          %v568 = vunpack.c.h.b16 %v493
          %v569 = vunpack.c.l.b16 %v494
          %v570 = vunpack.c.h.b16 %v494
          %v571 = vunpack.c.l.b16 %v495
          %v572 = vunpack.c.h.b16 %v495
          %v573 = vunpack.c.l.b16 %v496
          %v574 = vunpack.c.h.b16 %v496
          %v575 = vunpack.c.l.b16 %v497
          %v576 = vunpack.c.h.b16 %v497
          %v577 = vunpack.c.l.b16 %v498
          %v578 = vunpack.c.h.b16 %v498
          %v579 = vunpack.c.l.b16 %v499
          %v580 = vunpack.c.h.b16 %v499
          %v581 = vunpack.c.l.b16 %v500
          %v582 = vunpack.c.h.b16 %v500
          %v583 = vunpack.c.l.b16 %v501
          %v584 = vunpack.c.h.b16 %v501
          %v585 = vunpack.c.l.b16 %v502
          %v586 = vunpack.c.h.b16 %v502
          %v587 = vunpack.c.l.b16 %v503
          %v588 = vunpack.c.h.b16 %v503
          %v589 = vunpack.c.l.b16 %v504
          %v590 = vunpack.c.h.b16 %v504
          %v591 = vunpack.c.l.b16 %v505
          %v592 = vunpack.c.h.b16 %v505
          %v593 = vunpack.c.l.b16 %v506
          %v594 = vunpack.c.h.b16 %v506
          %v595 = vunpack.c.l.b16 %v507
          %v596 = vunpack.c.h.b16 %v507
          %v597 = vunpack.c.l.b16 %v508
          %v598 = vunpack.c.h.b16 %v508
          %v599 = vunpack.c.l.b16 %v509
          %v600 = vunpack.c.h.b16 %v509
          %v601 = vunpack.c.l.b16 %v510
          %v602 = vunpack.c.h.b16 %v510
          %v603 = vunpack.c.l.b16 %v511
          %v604 = vunpack.c.h.b16 %v511
          %v605 = vunpack.c.l.b16 %v512
          %v606 = vunpack.c.h.b16 %v512
          %v607 = vunpack.c.l.b16 %v513
          %v608 = vunpack.c.h.b16 %v513
          %v609 = vunpack.c.l.b16 %v514
          %v610 = vunpack.c.h.b16 %v514
          %v611 = vpack.c.b16 %v551, %v547
          %v612 = vpack.c.b16 %v552, %v548
          %v613 = vpack.c.b16 %v553, %v549
          %v614 = vpack.c.b16 %v554, %v550
          %v615 = vpack.c.b16 %v559, %v555
          %v616 = vpack.c.b16 %v560, %v556
          %v617 = vpack.c.b16 %v561, %v557
          %v618 = vpack.c.b16 %v562, %v558
          %v619 = vpack.c.b16 %v567, %v563
          %v620 = vpack.c.b16 %v568, %v564
          %v621 = vpack.c.b16 %v569, %v565
          %v622 = vpack.c.b16 %v570, %v566
          %v623 = vpack.c.b16 %v575, %v571
          %v624 = vpack.c.b16 %v576, %v572
          %v625 = vpack.c.b16 %v577, %v573
          %v626 = vpack.c.b16 %v578, %v574
          %v627 = vpack.c.b16 %v583, %v579
          %v628 = vpack.c.b16 %v584, %v580
          %v629 = vpack.c.b16 %v585, %v581
          %v630 = vpack.c.b16 %v586, %v582
          %v631 = vpack.c.b16 %v591, %v587
          %v632 = vpack.c.b16 %v592, %v588
          %v633 = vpack.c.b16 %v593, %v589
          %v634 = vpack.c.b16 %v594, %v590
          %v635 = vpack.c.b16 %v599, %v595
          %v636 = vpack.c.b16 %v600, %v596
          %v637 = vpack.c.b16 %v601, %v597
          %v638 = vpack.c.b16 %v602, %v598
          %v639 = vpack.c.b16 %v607, %v603
          %v640 = vpack.c.b16 %v608, %v604
          %v641 = vpack.c.b16 %v609, %v605
          %v642 = vpack.c.b16 %v610, %v606
          %675 = vmatprep.subr.bf16.mxu0 %v612
          %676 = vmatpush1.bf16.msra.mxu0 %v611
          %677 = vmatprep.subr.bf16.mxu0 %v616
          %678 = vmatpush1.bf16.msra.mxu0 %v615
          %679 = vmatprep.subr.bf16.mxu0 %v620
          %680 = vmatpush1.bf16.msra.mxu0 %v619
          %681 = vmatprep.subr.bf16.mxu0 %v624
          %682 = vmatpush1.bf16.msra.mxu0 %v623
          %683 = vmatprep.subr.bf16.mxu0 %v628
          %684 = vmatpush1.bf16.msra.mxu0 %v627
          %685 = vmatprep.subr.bf16.mxu0 %v632
          %686 = vmatpush1.bf16.msra.mxu0 %v631
          %687 = vmatprep.subr.bf16.mxu0 %v636
          %688 = vmatpush1.bf16.msra.mxu0 %v635
          %689 = vmatprep.subr.bf16.mxu0 %v640
          %690 = vmatpush1.bf16.msra.mxu0 %v639
          %691 = vmatprep.subr.bf16.mxu0 0
          %692 = vmatpush1.bf16.msra.mxu0 0
          %693 = vmatprep.subr.bf16.mxu0 0
          %694 = vmatpush1.bf16.msra.mxu0 0
          %695 = vmatprep.subr.bf16.mxu0 0
          %696 = vmatpush1.bf16.msra.mxu0 0
          %697 = vmatprep.subr.bf16.mxu0 0
          %698 = vmatpush1.bf16.msra.mxu0 0
          %699 = vmatprep.subr.bf16.mxu0 0
          %700 = vmatpush1.bf16.msra.mxu0 0
          %701 = vmatprep.subr.bf16.mxu0 0
          %702 = vmatpush1.bf16.msra.mxu0 0
          %703 = vmatprep.subr.bf16.mxu0 0
          %704 = vmatpush1.bf16.msra.mxu0 0
          %705 = vmatprep.subr.bf16.mxu0 0
          %706 = vmatpush1.bf16.msra.mxu0 0
          %707 = vmatprep.mubr.bf16.mxu0 0
          %708 = vmatmul.mubr.bf16.gmra.mrb[0].mxu0 %v482
          %v709 = vpop.f32.mrb[0].mxu0
          %v710 = vadd.f32 0.0, %v709
          %v711 = vpop.f32.mrb[0].mxu0
          %v712 = vadd.f32 0.0, %v711
          %v713 = vpop.f32.mrb[0].mxu0
          %v714 = vpop.f32.mrb[0].mxu0
          %715 = vdwg.mxu0
          %716 = vmatprep.subr.bf16.mxu0 %v614
          %717 = vmatpush1.bf16.msra.mxu0 %v613
          %718 = vmatprep.subr.bf16.mxu0 %v618
          %719 = vmatpush1.bf16.msra.mxu0 %v617
          %720 = vmatprep.subr.bf16.mxu0 %v622
          %721 = vmatpush1.bf16.msra.mxu0 %v621
          %722 = vmatprep.subr.bf16.mxu0 %v626
          %723 = vmatpush1.bf16.msra.mxu0 %v625
          %724 = vmatprep.subr.bf16.mxu0 %v630
          %725 = vmatpush1.bf16.msra.mxu0 %v629
          %726 = vmatprep.subr.bf16.mxu0 %v634
          %727 = vmatpush1.bf16.msra.mxu0 %v633
          %728 = vmatprep.subr.bf16.mxu0 %v638
          %729 = vmatpush1.bf16.msra.mxu0 %v637
          %730 = vmatprep.subr.bf16.mxu0 %v642
          %731 = vmatpush1.bf16.msra.mxu0 %v641
          %732 = vmatprep.subr.bf16.mxu0 0
          %733 = vmatpush1.bf16.msra.mxu0 0
          %734 = vmatprep.subr.bf16.mxu0 0
          %735 = vmatpush1.bf16.msra.mxu0 0
          %736 = vmatprep.subr.bf16.mxu0 0
          %737 = vmatpush1.bf16.msra.mxu0 0
          %738 = vmatprep.subr.bf16.mxu0 0
          %739 = vmatpush1.bf16.msra.mxu0 0
          %740 = vmatprep.subr.bf16.mxu0 0
          %741 = vmatpush1.bf16.msra.mxu0 0
          %742 = vmatprep.subr.bf16.mxu0 0
          %743 = vmatpush1.bf16.msra.mxu0 0
          %744 = vmatprep.subr.bf16.mxu0 0
          %745 = vmatpush1.bf16.msra.mxu0 0
          %746 = vmatprep.subr.bf16.mxu0 0
          %747 = vmatpush1.bf16.msra.mxu0 0
          %748 = vmatprep.mubr.bf16.mxu0 0
          %749 = vmatmul.mubr.bf16.gmra.mrb[0].mxu0 %v482
          %v750 = vpop.f32.mrb[0].mxu0
          %v751 = vadd.f32 0.0, %v750
          %v752 = vpop.f32.mrb[0].mxu0
          %v753 = vadd.f32 0.0, %v752
          %v754 = vpop.f32.mrb[0].mxu0
          %v755 = vpop.f32.mrb[0].mxu0
          %756 = vdwg.mxu0
          %v789 = vunpack.c.l.b16 %v449
          %v790 = vunpack.c.h.b16 %v449
          %v791 = vunpack.c.l.b16 %v450
          %v792 = vunpack.c.h.b16 %v450
          %v793 = vunpack.c.l.b16 %v451
          %v794 = vunpack.c.h.b16 %v451
          %v795 = vunpack.c.l.b16 %v452
          %v796 = vunpack.c.h.b16 %v452
          %v797 = vunpack.c.l.b16 %v453
          %v798 = vunpack.c.h.b16 %v453
          %v799 = vunpack.c.l.b16 %v454
          %v800 = vunpack.c.h.b16 %v454
          %v801 = vunpack.c.l.b16 %v455
          %v802 = vunpack.c.h.b16 %v455
          %v803 = vunpack.c.l.b16 %v456
          %v804 = vunpack.c.h.b16 %v456
          %v805 = vunpack.c.l.b16 %v457
          %v806 = vunpack.c.h.b16 %v457
          %v807 = vunpack.c.l.b16 %v458
          %v808 = vunpack.c.h.b16 %v458
          %v809 = vunpack.c.l.b16 %v459
          %v810 = vunpack.c.h.b16 %v459
          %v811 = vunpack.c.l.b16 %v460
          %v812 = vunpack.c.h.b16 %v460
          %v813 = vunpack.c.l.b16 %v461
          %v814 = vunpack.c.h.b16 %v461
          %v815 = vunpack.c.l.b16 %v462
          %v816 = vunpack.c.h.b16 %v462
          %v817 = vunpack.c.l.b16 %v463
          %v818 = vunpack.c.h.b16 %v463
          %v819 = vunpack.c.l.b16 %v464
          %v820 = vunpack.c.h.b16 %v464
          %v821 = vunpack.c.l.b16 %v465
          %v822 = vunpack.c.h.b16 %v465
          %v823 = vunpack.c.l.b16 %v466
          %v824 = vunpack.c.h.b16 %v466
          %v825 = vunpack.c.l.b16 %v467
          %v826 = vunpack.c.h.b16 %v467
          %v827 = vunpack.c.l.b16 %v468
          %v828 = vunpack.c.h.b16 %v468
          %v829 = vunpack.c.l.b16 %v469
          %v830 = vunpack.c.h.b16 %v469
          %v831 = vunpack.c.l.b16 %v470
          %v832 = vunpack.c.h.b16 %v470
          %v833 = vunpack.c.l.b16 %v471
          %v834 = vunpack.c.h.b16 %v471
          %v835 = vunpack.c.l.b16 %v472
          %v836 = vunpack.c.h.b16 %v472
          %v837 = vunpack.c.l.b16 %v473
          %v838 = vunpack.c.h.b16 %v473
          %v839 = vunpack.c.l.b16 %v474
          %v840 = vunpack.c.h.b16 %v474
          %v841 = vunpack.c.l.b16 %v475
          %v842 = vunpack.c.h.b16 %v475
          %v843 = vunpack.c.l.b16 %v476
          %v844 = vunpack.c.h.b16 %v476
          %v845 = vunpack.c.l.b16 %v477
          %v846 = vunpack.c.h.b16 %v477
          %v847 = vunpack.c.l.b16 %v478
          %v848 = vunpack.c.h.b16 %v478
          %v849 = vunpack.c.l.b16 %v479
          %v850 = vunpack.c.h.b16 %v479
          %v851 = vunpack.c.l.b16 %v480
          %v852 = vunpack.c.h.b16 %v480
          %v853 = vpack.c.b16 %v793, %v789
          %v854 = vpack.c.b16 %v794, %v790
          %v855 = vpack.c.b16 %v795, %v791
          %v856 = vpack.c.b16 %v796, %v792
          %v857 = vpack.c.b16 %v801, %v797
          %v858 = vpack.c.b16 %v802, %v798
          %v859 = vpack.c.b16 %v803, %v799
          %v860 = vpack.c.b16 %v804, %v800
          %v861 = vpack.c.b16 %v809, %v805
          %v862 = vpack.c.b16 %v810, %v806
          %v863 = vpack.c.b16 %v811, %v807
          %v864 = vpack.c.b16 %v812, %v808
          %v865 = vpack.c.b16 %v817, %v813
          %v866 = vpack.c.b16 %v818, %v814
          %v867 = vpack.c.b16 %v819, %v815
          %v868 = vpack.c.b16 %v820, %v816
          %v869 = vpack.c.b16 %v825, %v821
          %v870 = vpack.c.b16 %v826, %v822
          %v871 = vpack.c.b16 %v827, %v823
          %v872 = vpack.c.b16 %v828, %v824
          %v873 = vpack.c.b16 %v833, %v829
          %v874 = vpack.c.b16 %v834, %v830
          %v875 = vpack.c.b16 %v835, %v831
          %v876 = vpack.c.b16 %v836, %v832
          %v877 = vpack.c.b16 %v841, %v837
          %v878 = vpack.c.b16 %v842, %v838
          %v879 = vpack.c.b16 %v843, %v839
          %v880 = vpack.c.b16 %v844, %v840
          %v881 = vpack.c.b16 %v849, %v845
          %v882 = vpack.c.b16 %v850, %v846
          %v883 = vpack.c.b16 %v851, %v847
          %v884 = vpack.c.b16 %v852, %v848
          %917 = vmatprep.subr.bf16.mxu0 %v854
          %918 = vmatpush1.bf16.msra.mxu0 %v853
          %919 = vmatprep.subr.bf16.mxu0 %v858
          %920 = vmatpush1.bf16.msra.mxu0 %v857
          %921 = vmatprep.subr.bf16.mxu0 %v862
          %922 = vmatpush1.bf16.msra.mxu0 %v861
          %923 = vmatprep.subr.bf16.mxu0 %v866
          %924 = vmatpush1.bf16.msra.mxu0 %v865
          %925 = vmatprep.subr.bf16.mxu0 %v870
          %926 = vmatpush1.bf16.msra.mxu0 %v869
          %927 = vmatprep.subr.bf16.mxu0 %v874
          %928 = vmatpush1.bf16.msra.mxu0 %v873
          %929 = vmatprep.subr.bf16.mxu0 %v878
          %930 = vmatpush1.bf16.msra.mxu0 %v877
          %931 = vmatprep.subr.bf16.mxu0 %v882
          %932 = vmatpush1.bf16.msra.mxu0 %v881
          %933 = vmatprep.subr.bf16.mxu0 0
          %934 = vmatpush1.bf16.msra.mxu0 0
          %935 = vmatprep.subr.bf16.mxu0 0
          %936 = vmatpush1.bf16.msra.mxu0 0
          %937 = vmatprep.subr.bf16.mxu0 0
          %938 = vmatpush1.bf16.msra.mxu0 0
          %939 = vmatprep.subr.bf16.mxu0 0
          %940 = vmatpush1.bf16.msra.mxu0 0
          %941 = vmatprep.subr.bf16.mxu0 0
          %942 = vmatpush1.bf16.msra.mxu0 0
          %943 = vmatprep.subr.bf16.mxu0 0
          %944 = vmatpush1.bf16.msra.mxu0 0
          %945 = vmatprep.subr.bf16.mxu0 0
          %946 = vmatpush1.bf16.msra.mxu0 0
          %947 = vmatprep.subr.bf16.mxu0 0
          %948 = vmatpush1.bf16.msra.mxu0 0
          %949 = vmatprep.mubr.bf16.mxu0 0
          %950 = vmatmul.mubr.bf16.gmra.mrb[0].mxu0 %v448
          %v951 = vpop.f32.mrb[0].mxu0
          %v952 = vadd.f32 %v710, %v951
          %v953 = vpop.f32.mrb[0].mxu0
          %v954 = vadd.f32 %v712, %v953
          %v955 = vpop.f32.mrb[0].mxu0
          %v956 = vpop.f32.mrb[0].mxu0
          %957 = vdwg.mxu0
          %958 = vmatprep.subr.bf16.mxu0 %v856
          %959 = vmatpush1.bf16.msra.mxu0 %v855
          %960 = vmatprep.subr.bf16.mxu0 %v860
          %961 = vmatpush1.bf16.msra.mxu0 %v859
          %962 = vmatprep.subr.bf16.mxu0 %v864
          %963 = vmatpush1.bf16.msra.mxu0 %v863
          %964 = vmatprep.subr.bf16.mxu0 %v868
          %965 = vmatpush1.bf16.msra.mxu0 %v867
          %966 = vmatprep.subr.bf16.mxu0 %v872
          %967 = vmatpush1.bf16.msra.mxu0 %v871
          %968 = vmatprep.subr.bf16.mxu0 %v876
          %969 = vmatpush1.bf16.msra.mxu0 %v875
          %970 = vmatprep.subr.bf16.mxu0 %v880
          %971 = vmatpush1.bf16.msra.mxu0 %v879
          %972 = vmatprep.subr.bf16.mxu0 %v884
          %973 = vmatpush1.bf16.msra.mxu0 %v883
          %974 = vmatprep.subr.bf16.mxu0 0
          %975 = vmatpush1.bf16.msra.mxu0 0
          %976 = vmatprep.subr.bf16.mxu0 0
          %977 = vmatpush1.bf16.msra.mxu0 0
          %978 = vmatprep.subr.bf16.mxu0 0
          %979 = vmatpush1.bf16.msra.mxu0 0
          %980 = vmatprep.subr.bf16.mxu0 0
          %981 = vmatpush1.bf16.msra.mxu0 0
          %982 = vmatprep.subr.bf16.mxu0 0
          %983 = vmatpush1.bf16.msra.mxu0 0
          %984 = vmatprep.subr.bf16.mxu0 0
          %985 = vmatpush1.bf16.msra.mxu0 0
          %986 = vmatprep.subr.bf16.mxu0 0
          %987 = vmatpush1.bf16.msra.mxu0 0
          %988 = vmatprep.subr.bf16.mxu0 0
          %989 = vmatpush1.bf16.msra.mxu0 0
          %990 = vmatprep.mubr.bf16.mxu0 0
          %991 = vmatmul.mubr.bf16.gmra.mrb[0].mxu0 %v448
          %v992 = vpop.f32.mrb[0].mxu0
          %v993 = vadd.f32 %v751, %v992
          %v994 = vpop.f32.mrb[0].mxu0
          %v995 = vadd.f32 %v753, %v994
          %v996 = vpop.f32.mrb[0].mxu0
          %v997 = vpop.f32.mrb[0].mxu0
          %998 = vdwg.mxu0
          %v999 = vld [vmem:[%s4] sm:$0xf]
          %v1001 = vlaneseq
          %v1002 = vshrl.u32 %v1001, 7
          %v1003 = vsub.s32 0, %v1002
          %v1004 = vrot.slane %v999, %v1003
          %v1005 = vlaneseq
          %v1006 = vshrl.u32 %v1005, 7
          %v1007 = vsub.s32 1, %v1006
          %v1008 = vrot.slane %v999, %v1007
          %v1009 = vlaneseq
          %v1010 = vshrl.u32 %v1009, 7
          %v1011 = vsub.s32 2, %v1010
          %v1012 = vrot.slane %v999, %v1011
          %v1013 = vlaneseq
          %v1014 = vshrl.u32 %v1013, 7
          %v1015 = vsub.s32 3, %v1014
          %v1016 = vrot.slane %v999, %v1015
          %v1021 = vadd.f32 %v952, %v1004
          %v1022 = vadd.f32 %v954, %v1008
          %v1023 = vadd.f32 %v993, %v1012
          %v1024 = vadd.f32 %v995, %v1016
          %v1025 = vxor.u32 %v1021, 2147483648
          %v1026 = vmul.f32 %v1025, 1.442695
          %v1027 = vpow.pop %v1026
          %v1028 = vadd.f32 %v1027, 1.0
          %v1029 = vrcp.pop %v1028
          %v1030 = vmul.f32 1.0, %v1029
          %v1031 = vxor.u32 %v1022, 2147483648
          %v1032 = vmul.f32 %v1031, 1.442695
          %v1033 = vpow.pop %v1032
          %v1034 = vadd.f32 %v1033, 1.0
          %v1035 = vrcp.pop %v1034
          %v1036 = vmul.f32 1.0, %v1035
          %v1037 = vtanh.pop %v1023
          %v1038 = vxor.u32 %v1024, 2147483648
          %v1039 = vmul.f32 %v1038, 1.442695
          %v1040 = vpow.pop %v1039
          %v1041 = vadd.f32 %v1040, 1.0
          %v1042 = vrcp.pop %v1041
          %v1043 = vmul.f32 1.0, %v1042
          %v1044 = vld [vmem:[%s8] sm:$0xff]
          %v1045 = vmul.f32 %v1036, %v1044
          %v1046 = vmul.f32 %v1030, %v1037
          %v1047 = vadd.f32 %v1045, %v1046
          %v1048 = vtanh.pop %v1047
          %v1049 = vmul.f32 %v1043, %v1048
          %1050 = vst [vmem:[%s10] sm:$0xff] %v1049
          %1051 = vst [vmem:[%s11] sm:$0xff] %v1047
          %v1052 = vpack.c.bf16 %v1049, %v1049
          %1053 = vst [vmem:[#allocation3] sm:$0xf] %v1052
        $region64: #{language_decoder_forward.1} parent=47 // pred_fallthru
          _
        %v1054 = vld [vmem:[#allocation3] sm:$0xf]
        %v1055 = vld [vmem:[%s353] sm:$0xff]
        %v1056 = vld [vmem:[%s353 + $0x8] sm:$0xff]
        %v1057 = vld [vmem:[%s353 + $0x10] sm:$0xff]
        %v1058 = vld [vmem:[%s353 + $0x18] sm:$0xff]
        %v1059 = vld [vmem:[%s353 + $0x20] sm:$0xff]
        %v1060 = vld [vmem:[%s353 + $0x28] sm:$0xff]
        %v1061 = vld [vmem:[%s353 + $0x30] sm:$0xff]
        %v1062 = vld [vmem:[%s353 + $0x38] sm:$0xff]
        %v1063 = vld [vmem:[%s353 + $0x40] sm:$0xff]
        %v1064 = vld [vmem:[%s353 + $0x48] sm:$0xff]
        %v1065 = vld [vmem:[%s353 + $0x50] sm:$0xff]
        %v1066 = vld [vmem:[%s353 + $0x58] sm:$0xff]
        %v1067 = vld [vmem:[%s353 + $0x60] sm:$0xff]
        %v1068 = vld [vmem:[%s353 + $0x68] sm:$0xff]
        %v1069 = vld [vmem:[%s353 + $0x70] sm:$0xff]
        %v1070 = vld [vmem:[%s353 + $0x78] sm:$0xff]
        %v1071 = vld [vmem:[%s396] sm:$0x3]
        %v1073 = vlaneseq
        %v1074 = vshrl.u32 %v1073, 7
        %v1075 = vsub.s32 0, %v1074
        %v1076 = vrot.slane %v1071, %v1075
        %v1077 = vlaneseq
        %v1078 = vshrl.u32 %v1077, 7
        %v1079 = vsub.s32 1, %v1078
        %v1080 = vrot.slane %v1071, %v1079
        %v1099 = vunpack.c.l.b16 %v1055
        %v1100 = vunpack.c.h.b16 %v1055
        %v1101 = vunpack.c.l.b16 %v1056
        %v1102 = vunpack.c.h.b16 %v1056
        %v1103 = vunpack.c.l.b16 %v1057
        %v1104 = vunpack.c.h.b16 %v1057
        %v1105 = vunpack.c.l.b16 %v1058
        %v1106 = vunpack.c.h.b16 %v1058
        %v1107 = vunpack.c.l.b16 %v1059
        %v1108 = vunpack.c.h.b16 %v1059
        %v1109 = vunpack.c.l.b16 %v1060
        %v1110 = vunpack.c.h.b16 %v1060
        %v1111 = vunpack.c.l.b16 %v1061
        %v1112 = vunpack.c.h.b16 %v1061
        %v1113 = vunpack.c.l.b16 %v1062
        %v1114 = vunpack.c.h.b16 %v1062
        %v1115 = vunpack.c.l.b16 %v1063
        %v1116 = vunpack.c.h.b16 %v1063
        %v1117 = vunpack.c.l.b16 %v1064
        %v1118 = vunpack.c.h.b16 %v1064
        %v1119 = vunpack.c.l.b16 %v1065
        %v1120 = vunpack.c.h.b16 %v1065
        %v1121 = vunpack.c.l.b16 %v1066
        %v1122 = vunpack.c.h.b16 %v1066
        %v1123 = vunpack.c.l.b16 %v1067
        %v1124 = vunpack.c.h.b16 %v1067
        %v1125 = vunpack.c.l.b16 %v1068
        %v1126 = vunpack.c.h.b16 %v1068
        %v1127 = vunpack.c.l.b16 %v1069
        %v1128 = vunpack.c.h.b16 %v1069
        %v1129 = vunpack.c.l.b16 %v1070
        %v1130 = vunpack.c.h.b16 %v1070
        %v1131 = vpack.c.b16 %v1101, %v1099
        %v1132 = vpack.c.b16 %v1102, %v1100
        %v1133 = vpack.c.b16 %v1105, %v1103
        %v1134 = vpack.c.b16 %v1106, %v1104
        %v1135 = vpack.c.b16 %v1109, %v1107
        %v1136 = vpack.c.b16 %v1110, %v1108
        %v1137 = vpack.c.b16 %v1113, %v1111
        %v1138 = vpack.c.b16 %v1114, %v1112
        %v1139 = vpack.c.b16 %v1117, %v1115
        %v1140 = vpack.c.b16 %v1118, %v1116
        %v1141 = vpack.c.b16 %v1121, %v1119
        %v1142 = vpack.c.b16 %v1122, %v1120
        %v1143 = vpack.c.b16 %v1125, %v1123
        %v1144 = vpack.c.b16 %v1126, %v1124
        %v1145 = vpack.c.b16 %v1129, %v1127
        %v1146 = vpack.c.b16 %v1130, %v1128
        %1163 = vmatprep.subr.bf16.mxu0 %v1132
        %1164 = vmatpush1.bf16.msra.mxu0 %v1131
        %1165 = vmatprep.subr.bf16.mxu0 %v1134
        %1166 = vmatpush1.bf16.msra.mxu0 %v1133
        %1167 = vmatprep.subr.bf16.mxu0 %v1136
        %1168 = vmatpush1.bf16.msra.mxu0 %v1135
        %1169 = vmatprep.subr.bf16.mxu0 %v1138
        %1170 = vmatpush1.bf16.msra.mxu0 %v1137
        %1171 = vmatprep.subr.bf16.mxu0 %v1140
        %1172 = vmatpush1.bf16.msra.mxu0 %v1139
        %1173 = vmatprep.subr.bf16.mxu0 %v1142
        %1174 = vmatpush1.bf16.msra.mxu0 %v1141
        %1175 = vmatprep.subr.bf16.mxu0 %v1144
        %1176 = vmatpush1.bf16.msra.mxu0 %v1143
        %1177 = vmatprep.subr.bf16.mxu0 %v1146
        %1178 = vmatpush1.bf16.msra.mxu0 %v1145
        %1179 = vmatprep.subr.bf16.mxu0 0
        %1180 = vmatpush1.bf16.msra.mxu0 0
        %1181 = vmatprep.subr.bf16.mxu0 0
        %1182 = vmatpush1.bf16.msra.mxu0 0
        %1183 = vmatprep.subr.bf16.mxu0 0
        %1184 = vmatpush1.bf16.msra.mxu0 0
        %1185 = vmatprep.subr.bf16.mxu0 0
        %1186 = vmatpush1.bf16.msra.mxu0 0
        %1187 = vmatprep.subr.bf16.mxu0 0
        %1188 = vmatpush1.bf16.msra.mxu0 0
        %1189 = vmatprep.subr.bf16.mxu0 0
        %1190 = vmatpush1.bf16.msra.mxu0 0
        %1191 = vmatprep.subr.bf16.mxu0 0
        %1192 = vmatpush1.bf16.msra.mxu0 0
        %1193 = vmatprep.subr.bf16.mxu0 0
        %1194 = vmatpush1.bf16.msra.mxu0 0
        %1195 = vmatprep.mubr.bf16.mxu0 0
        %1196 = vmatmul.mubr.bf16.gmra.mrb[0].mxu0 %v1054
        %v1197 = vpop.f32.mrb[0].mxu0
        %v1198 = vadd.f32 %v1076, %v1197
        %v1199 = vpop.f32.mrb[0].mxu0
        %v1200 = vadd.f32 %v1080, %v1199
        %v1201 = vpop.f32.mrb[0].mxu0
        %v1202 = vpop.f32.mrb[0].mxu0
        %1203 = vdwg.mxu0
        %1204 = vst [vmem:[%s402] sm:$0xff] %v1198
        %1205 = vst [vmem:[%s402 + $0x8] sm:$0xff] %v1200
        %s1206 = smul.u32 2, %s31
        %p1207 = scmp.lt.s32.totalorder %s1206, 3
        %s1208 = scalar_select %p1207, %s1206, 3
        %s1209 = smul.addr %s1208, 8
        %s1210 = scalar_lea.vmem %s9, %s1209
        // Predicated region
        $region73: #{language_decoder_forward.1} parent=47 // pred_check
          %p1211 = pneg %p206
        $region74: #{language_decoder_forward.1} parent=47 // pred_check_branch
          %1213 = sbr.rel (%p1211) target = $region76
        $region75: #{language_decoder_forward.1} parent=47 // pred_region
          %s1214 = smul.u32 2, %s31
        $region76: #{language_decoder_forward.1} parent=47 // pred_fallthru
          _
        // Predicated region
        $region77: #{language_decoder_forward.1} parent=47 // pred_check
          %p1215 = pneg %p227
        $region78: #{language_decoder_forward.1} parent=47 // pred_check_branch
          %1217 = sbr.rel (%p1215) target = $region80
        $region79: #{language_decoder_forward.1} parent=47 // pred_region
          _
        $region80: #{language_decoder_forward.1} parent=47 // pred_fallthru
          _
        // Predicated region
        $region81: #{language_decoder_forward.1} parent=47 // pred_check
          %p1218 = pneg %p248
        $region82: #{language_decoder_forward.1} parent=47 // pred_check_branch
          %1220 = sbr.rel (%p1218) target = $region84
        $region83: #{language_decoder_forward.1} parent=47 // pred_region
          _
        $region84: #{language_decoder_forward.1} parent=47 // pred_fallthru
          _
        // Predicated region
        $region85: #{language_decoder_forward.1} parent=47 // pred_check
          %p1221 = pneg %p227
        $region86: #{language_decoder_forward.1} parent=47 // pred_check_branch
          %1223 = sbr.rel (%p1221) target = $region88
        $region87: #{language_decoder_forward.1} parent=47 // pred_region
          _
        $region88: #{language_decoder_forward.1} parent=47 // pred_fallthru
          _
        // Predicated region
        $region89: #{language_decoder_forward.1} parent=47 // pred_check
          %p1224 = pneg %p248
        $region90: #{language_decoder_forward.1} parent=47 // pred_check_branch
          %1226 = sbr.rel (%p1224) target = $region92
        $region91: #{language_decoder_forward.1} parent=47 // pred_region
          _
        $region92: #{language_decoder_forward.1} parent=47 // pred_fallthru
          _
      $region48: #{language_decoder_forward.1} parent=5 // pred_fallthru
        _
      %p1227 = scmp.le.s32.totalorder 2, %s26
      // Predicated region
      $region93: #{language_decoder_forward.1} parent=5 // pred_check
        %p1228 = pneg %p1227
      $region94: #{language_decoder_forward.1} parent=5 // pred_check_branch
        %1230 = sbr.rel (%p1228) target = $region96
      $region95: #{language_decoder_forward.1} parent=5 // pred_region
        %s1231 = ssub.s32 %s26, 2
        // Predicated region
        $region97: #{language_decoder_forward.1} parent=95 // pred_check
          %p1232 = pneg %p212
        $region98: #{language_decoder_forward.1} parent=95 // pred_check_branch
          %1234 = sbr.rel (%p1232) target = $region100
        $region99: #{language_decoder_forward.1} parent=95 // pred_region
          %s1235 = smul.u32 2, %s32
          %p1236 = scmp.lt.s32.totalorder %s1235, 3
          %s1237 = scalar_select %p1236, %s1235, 3
          %s1238 = smul.addr %s1237, 8
          %s1239 = scalar_lea.vmem %s9, %s1238
        $region100: #{language_decoder_forward.1} parent=95 // pred_fallthru
          _
      $region96: #{language_decoder_forward.1} parent=5 // pred_fallthru
        _
    $region6: #{language_decoder_forward.1} parent=1 // loop_footer
      %s30 = sadd.s32 1, %s26
    $region7: #{language_decoder_forward.1} parent=1 // loop_footer_branch
      %25 = sbr.rel target = $region3
    $region8: #{language_decoder_forward.1} parent=1 // loop_exit
      _
    %1240 = vsyncpa [#allocation8], 1
    %s1241 = scalar_lea.sflag [#allocation8], 1
    %1242 = vsyncpa %s1241, 1
    %1243 = vsyncpa [#allocation10], 1
  %1244 = vsyncmov [#allocation4]
  %s1245 = vpop.sfrf %1244
  %p1246 = scmp.eq.s32.totalorder %s1245, 0
  %p1247 = pneg %p1246
  %1249 = shalt.err (%p1247)
  %s1250 = scalar_lea.sflag [#allocation4], 1
  %1251 = vsyncmov %s1250
  %s1252 = vpop.sfrf %1251
  %p1253 = scmp.eq.s32.totalorder %s1252, 0
  %p1254 = pneg %p1253
  %1256 = shalt.err (%p1254)
  %s1257 = scalar_lea.sflag [#allocation4], 2
  %1258 = vsyncmov %s1257
  %s1259 = vpop.sfrf %1258
  %p1260 = scmp.eq.s32.totalorder %s1259, 0
  %p1261 = pneg %p1260
  %1263 = shalt.err (%p1261)
  %s1264 = scalar_lea.sflag [#allocation4], 3
  %1265 = vsyncmov %s1264
  %s1266 = vpop.sfrf %1265
  %p1267 = scmp.eq.s32.totalorder %s1266, 0
  %p1268 = pneg %p1267
  %1270 = shalt.err (%p1268)
  %s1271 = scalar_lea.sflag [#allocation4], 4
  %1272 = vsyncmov %s1271
  %s1273 = vpop.sfrf %1272
  %p1274 = scmp.eq.s32.totalorder %s1273, 0
  %p1275 = pneg %p1274
  %1277 = shalt.err (%p1275)
  %s1278 = scalar_lea.sflag [#allocation4], 5
  %1279 = vsyncmov %s1278
  %s1280 = vpop.sfrf %1279
  %p1281 = scmp.eq.s32.totalorder %s1280, 0
  %p1282 = pneg %p1281
  %1284 = shalt.err (%p1282)
  %s1285 = scalar_lea.sflag [#allocation4], 6
  %1286 = vsyncmov %s1285
  %s1287 = vpop.sfrf %1286
  %p1288 = scmp.eq.s32.totalorder %s1287, 0
  %p1289 = pneg %p1288
  %1291 = shalt.err (%p1289)
  %s1292 = scalar_lea.sflag [#allocation4], 7
  %1293 = vsyncmov %s1292
  %s1294 = vpop.sfrf %1293
  %p1295 = scmp.eq.s32.totalorder %s1294, 0
  %p1296 = pneg %p1295
  %1298 = shalt.err (%p1296)

</llo_original>
